<compile_context>
chip_gen: v6e
topology: v6e:2x2x1
jax: 0.10.0
libtpu: 0.0.40
codegen_flags: <defaults>
</compile_context>

<pallas_src>
import jax
import jax.numpy as jnp
from jax.experimental import pallas as pl
from jax.experimental.pallas import tpu as pltpu


def _make_agg_kernel(num_layers, inv_sqrt_h):
    """Build a kernel closed over the (static) number of layers."""

    def kernel(q_ref, *refs):
        # q_ref:   [H, 1]  learnable query column (layers' native dtype)
        # refs[:L] [TN, H] one tile per layer, native dtype
        # refs[L]  [TN, H] output tile
        layer_refs = refs[:num_layers]
        o_ref = refs[num_layers]

        q_col = q_ref[...]  # hoisted once; feeds the MXU directly, no broadcast

        # ---- pass 1: per-layer scores on the MXU (native dtype in, f32 out).
        scores = []
        for xl_ref in layer_refs:
            s = jnp.dot(
                xl_ref[...], q_col,
                preferred_element_type=jnp.float32,
                precision=jax.lax.Precision.HIGHEST,
            )                                                    # [TN, 1] f32
            scores.append(s * inv_sqrt_h)

        # Numerically-stable softmax over the layer axis (tiny [TN, 1] tensors).
        m = scores[0]
        for s in scores[1:]:
            m = jnp.maximum(m, s)
        exps = [jnp.exp(s - m) for s in scores]                  # [TN, 1] each
        denom = exps[0]
        for e in exps[1:]:
            denom = denom + e
        inv_denom = 1.0 / denom                                  # exact; tiny

        # ---- pass 2: single f32 cast per layer, weight multiply fused into the add.
        acc = layer_refs[0][...].astype(jnp.float32) * (exps[0] * inv_denom)
        for l in range(1, num_layers):
            w = exps[l] * inv_denom                              # [TN, 1]
            acc = acc + layer_refs[l][...].astype(jnp.float32) * w
        o_ref[...] = acc.astype(o_ref.dtype)

    return kernel


def layerwise_token_aggregator(layer_outputs, query, *, token_tile=1024):
    """layer_outputs: list (len = num_layers) of [B, S, H] arrays (any float dtype).
    query: [H]. Returns [B, S, H] in the layer dtype."""
    L = len(layer_outputs)
    B, S, H = layer_outputs[0].shape
    N = B * S
    in_dtype = layer_outputs[0].dtype
    out_dtype = in_dtype
    in_bytes = jnp.dtype(in_dtype).itemsize

    # Sublane packing for the token (second-to-last) dim: 8 f32, 16 bf16, 32 int8/fp8.
    sub = max(8, 32 // max(1, in_bytes))

    # Layers stay in their native dtype on the wire, flattened to [N, H].
    layers = [x.reshape(N, H) for x in layer_outputs]
    # Query as an [H, 1] column in the layers' native dtype (feeds the MXU).
    q_col = query.reshape(H, 1).astype(in_dtype)

    # ---- generation-aware VMEM budget ---------------------------------------
    try:
        info = pltpu.get_tpu_info()
        vmem_cap = int(getattr(info, "vmem_capacity_bytes", 64 << 20))
    except Exception:  # conservative (v7x-sized) fallback
        vmem_cap = 64 << 20
    vmem_budget = (vmem_cap * 3) // 4          # ~48 MiB on v7x, ~96 MiB on v5e/v6e

    # Honest per-token VMEM cost: double-buffered layer tiles + output tile,
    # f32 accumulator + one cast/product temp, and the L [tn,1] score/exp vregs
    # (lane-padded to 128).
    per_token = (2 * L * H * in_bytes           # double-buffered per-layer input tiles
                 + 2 * H * in_bytes             # double-buffered output tile
                 + 2 * H * 4                    # f32 accumulator + cast/product temp
                 + 2 * L * 128 * 4)             # [tn,1] score/exp vregs (lane-padded)

    tn = min(token_tile, max(1, vmem_budget // per_token), N)
    tn = max(sub, (tn // sub) * sub)

    # Give the pipeline depth and feed both v7x TensorCores: >= 2 grid steps.
    if pl.cdiv(N, tn) < 2 and N > sub:
        tn = max(sub, (pl.cdiv(N, 2) // sub) * sub)

    grid = (pl.cdiv(N, tn),)                    # partial last block masked by Pallas

    footprint = per_token * tn + 2 * H * in_bytes + (4 << 20)   # + Mosaic scratch slack
    vmem_limit = int(min(max(footprint, 32 << 20), vmem_cap - (12 << 20)))

    layer_spec = pl.BlockSpec((tn, H), lambda i: (i, 0))

    # NOTE: H is the lane (last) dim everywhere; in production H should be a multiple
    # of 128 for unmasked lane-dense stores (here it equals the full dim, so it's legal).
    out = pl.pallas_call(
        _make_agg_kernel(L, 1.0 / (H ** 0.5)),
        out_shape=jax.ShapeDtypeStruct((N, H), out_dtype),
        grid_spec=pltpu.PrefetchScalarGridSpec(
            num_scalar_prefetch=0,
            grid=grid,
            in_specs=[pl.BlockSpec((H, 1), lambda i: (0, 0))] + [layer_spec] * L,
            out_specs=pl.BlockSpec((tn, H), lambda i: (i, 0)),
        ),
        compiler_params=pltpu.CompilerParams(
            dimension_semantics=("parallel",),   # shards token axis across TCs
            vmem_limit_bytes=vmem_limit,
        ),
    )(q_col, *layers)

    return out.reshape(B, S, H)


def _reference(layer_outputs, query):
    L = len(layer_outputs)
    B, S, H = layer_outputs[0].shape
    x = jnp.stack(layer_outputs, axis=1)           # [B, L, S, H]
    x = jnp.transpose(x, (0, 2, 1, 3))             # [B, S, L, H]
    x = x.reshape(-1, L, H).astype(jnp.float32)    # [N, L, H]
    scores = jnp.einsum("h,nlh->nl", query.astype(jnp.float32), x,
                        precision=jax.lax.Precision.HIGHEST) / (H ** 0.5)
    w = jax.nn.softmax(scores, axis=-1)            # [N, L]
    out = jnp.einsum("nl,nlh->nh", w, x,
                     precision=jax.lax.Precision.HIGHEST)        # [N, H]
    return out.reshape(B, S, H)


if __name__ == "__main__":
    key = jax.random.PRNGKey(0)
    B, S, H, L = 2, 8, 32, 4  # batch, seq, hidden_dim, num_layers

    kq, kx = jax.random.split(key)
    # deterministic "torch.randn(hidden_dim)" analogue
    query = jax.random.normal(kq, (H,), dtype=jnp.float32)
    layer_keys = jax.random.split(kx, L)
    layer_outputs = [
        jax.random.normal(k, (B, S, H), dtype=jnp.float32) for k in layer_keys
    ]

    out = layerwise_token_aggregator(layer_outputs, query)
    out = jax.block_until_ready(out)

    ref = _reference(layer_outputs, query)
    assert out.shape == (B, S, H)
    assert jnp.allclose(out, ref, atol=1e-3, rtol=1e-3), "mismatch vs reference"
    print("KERNEL_OK")
</pallas_src>

<mosaic_0001>
module attributes {stable_mosaic.version = 11 : i64} {
  func.func @kernel(%arg0: i32, %arg1: memref<32x1xf32, #tpu.memory_space<vmem>>, %arg2: memref<8x32xf32, #tpu.memory_space<vmem>>, %arg3: memref<8x32xf32, #tpu.memory_space<vmem>>, %arg4: memref<8x32xf32, #tpu.memory_space<vmem>>, %arg5: memref<8x32xf32, #tpu.memory_space<vmem>>, %arg6: memref<8x32xf32, #tpu.memory_space<vmem>>) attributes {dimension_semantics = [#tpu.dimension_semantics<parallel>], iteration_bounds = array<i64: 2>, scalar_prefetch = 0 : i64, scratch_operands = 0 : i64, tpu.core_type = #tpu.core_type<tc>, window_params = [{pipeline_mode = #tpu.pipeline_mode<synchronous>, transform_indices = @transform_0, window_bounds = array<i64: 32, 1>}, {transform_indices = @transform_1, window_bounds = array<i64: 8, 32>}, {transform_indices = @transform_2, window_bounds = array<i64: 8, 32>}, {transform_indices = @transform_3, window_bounds = array<i64: 8, 32>}, {transform_indices = @transform_4, window_bounds = array<i64: 8, 32>}, {transform_indices = @transform_5, window_bounds = array<i64: 8, 32>}]} {
    %c0 = arith.constant 0 : index
    %c0_0 = arith.constant 0 : index
    %0 = vector.load %arg1[%c0, %c0_0] : memref<32x1xf32, #tpu.memory_space<vmem>>, vector<32x1xf32>
    %c0_1 = arith.constant 0 : index
    %c0_2 = arith.constant 0 : index
    %1 = vector.load %arg2[%c0_1, %c0_2] : memref<8x32xf32, #tpu.memory_space<vmem>>, vector<8x32xf32>
    %cst = arith.constant dense<0.000000e+00> : vector<8x1xf32>
    %2 = tpu.matmul %1, %0, %cst {dimension_numbers = #tpu.dot_dimension_numbers<[1], [0], [0], [1], [0, 0, 1, 1], [], []>, precision = #tpu.contract_precision<fp32>} : vector<8x32xf32>, vector<32x1xf32>, vector<8x1xf32> -> vector<8x1xf32>
    %cst_3 = arith.constant 0.176776692 : f32
    %3 = vector.broadcast %cst_3 : f32 to vector<8x1xf32>
    %4 = arith.mulf %2, %3 : vector<8x1xf32>
    %c0_4 = arith.constant 0 : index
    %c0_5 = arith.constant 0 : index
    %5 = vector.load %arg3[%c0_4, %c0_5] : memref<8x32xf32, #tpu.memory_space<vmem>>, vector<8x32xf32>
    %cst_6 = arith.constant dense<0.000000e+00> : vector<8x1xf32>
    %6 = tpu.matmul %5, %0, %cst_6 {dimension_numbers = #tpu.dot_dimension_numbers<[1], [0], [0], [1], [0, 0, 1, 1], [], []>, precision = #tpu.contract_precision<fp32>} : vector<8x32xf32>, vector<32x1xf32>, vector<8x1xf32> -> vector<8x1xf32>
    %cst_7 = arith.constant 0.176776692 : f32
    %7 = vector.broadcast %cst_7 : f32 to vector<8x1xf32>
    %8 = arith.mulf %6, %7 : vector<8x1xf32>
    %c0_8 = arith.constant 0 : index
    %c0_9 = arith.constant 0 : index
    %9 = vector.load %arg4[%c0_8, %c0_9] : memref<8x32xf32, #tpu.memory_space<vmem>>, vector<8x32xf32>
    %cst_10 = arith.constant dense<0.000000e+00> : vector<8x1xf32>
    %10 = tpu.matmul %9, %0, %cst_10 {dimension_numbers = #tpu.dot_dimension_numbers<[1], [0], [0], [1], [0, 0, 1, 1], [], []>, precision = #tpu.contract_precision<fp32>} : vector<8x32xf32>, vector<32x1xf32>, vector<8x1xf32> -> vector<8x1xf32>
    %cst_11 = arith.constant 0.176776692 : f32
    %11 = vector.broadcast %cst_11 : f32 to vector<8x1xf32>
    %12 = arith.mulf %10, %11 : vector<8x1xf32>
    %c0_12 = arith.constant 0 : index
    %c0_13 = arith.constant 0 : index
    %13 = vector.load %arg5[%c0_12, %c0_13] : memref<8x32xf32, #tpu.memory_space<vmem>>, vector<8x32xf32>
    %cst_14 = arith.constant dense<0.000000e+00> : vector<8x1xf32>
    %14 = tpu.matmul %13, %0, %cst_14 {dimension_numbers = #tpu.dot_dimension_numbers<[1], [0], [0], [1], [0, 0, 1, 1], [], []>, precision = #tpu.contract_precision<fp32>} : vector<8x32xf32>, vector<32x1xf32>, vector<8x1xf32> -> vector<8x1xf32>
    %cst_15 = arith.constant 0.176776692 : f32
    %15 = vector.broadcast %cst_15 : f32 to vector<8x1xf32>
    %16 = arith.mulf %14, %15 : vector<8x1xf32>
    %17 = arith.maximumf %4, %8 : vector<8x1xf32>
    %18 = arith.maximumf %17, %12 : vector<8x1xf32>
    %19 = arith.maximumf %18, %16 : vector<8x1xf32>
    %20 = arith.subf %4, %19 : vector<8x1xf32>
    %21 = math.exp %20 : vector<8x1xf32>
    %22 = arith.subf %8, %19 : vector<8x1xf32>
    %23 = math.exp %22 : vector<8x1xf32>
    %24 = arith.subf %12, %19 : vector<8x1xf32>
    %25 = math.exp %24 : vector<8x1xf32>
    %26 = arith.subf %16, %19 : vector<8x1xf32>
    %27 = math.exp %26 : vector<8x1xf32>
    %28 = arith.addf %21, %23 : vector<8x1xf32>
    %29 = arith.addf %28, %25 : vector<8x1xf32>
    %30 = arith.addf %29, %27 : vector<8x1xf32>
    %cst_16 = arith.constant 1.000000e+00 : f32
    %31 = vector.broadcast %cst_16 : f32 to vector<8x1xf32>
    %32 = arith.divf %31, %30 : vector<8x1xf32>
    %c0_17 = arith.constant 0 : index
    %c0_18 = arith.constant 0 : index
    %33 = vector.load %arg2[%c0_17, %c0_18] : memref<8x32xf32, #tpu.memory_space<vmem>>, vector<8x32xf32>
    %34 = arith.mulf %21, %32 : vector<8x1xf32>
    %35 = vector.broadcast %34 : vector<8x1xf32> to vector<8x32xf32>
    %36 = arith.mulf %33, %35 : vector<8x32xf32>
    %37 = arith.mulf %23, %32 : vector<8x1xf32>
    %c0_19 = arith.constant 0 : index
    %c0_20 = arith.constant 0 : index
    %38 = vector.load %arg3[%c0_19, %c0_20] : memref<8x32xf32, #tpu.memory_space<vmem>>, vector<8x32xf32>
    %39 = vector.broadcast %37 : vector<8x1xf32> to vector<8x32xf32>
    %40 = arith.mulf %38, %39 : vector<8x32xf32>
    %41 = arith.addf %36, %40 : vector<8x32xf32>
    %42 = arith.mulf %25, %32 : vector<8x1xf32>
    %c0_21 = arith.constant 0 : index
    %c0_22 = arith.constant 0 : index
    %43 = vector.load %arg4[%c0_21, %c0_22] : memref<8x32xf32, #tpu.memory_space<vmem>>, vector<8x32xf32>
    %44 = vector.broadcast %42 : vector<8x1xf32> to vector<8x32xf32>
    %45 = arith.mulf %43, %44 : vector<8x32xf32>
    %46 = arith.addf %41, %45 : vector<8x32xf32>
    %47 = arith.mulf %27, %32 : vector<8x1xf32>
    %c0_23 = arith.constant 0 : index
    %c0_24 = arith.constant 0 : index
    %48 = vector.load %arg5[%c0_23, %c0_24] : memref<8x32xf32, #tpu.memory_space<vmem>>, vector<8x32xf32>
    %49 = vector.broadcast %47 : vector<8x1xf32> to vector<8x32xf32>
    %50 = arith.mulf %48, %49 : vector<8x32xf32>
    %51 = arith.addf %46, %50 : vector<8x32xf32>
    %c0_25 = arith.constant 0 : index
    %c0_26 = arith.constant 0 : index
    %52 = vector.load %arg6[%c0_25, %c0_26] : memref<8x32xf32, #tpu.memory_space<vmem>>, vector<8x32xf32>
    tpu.vector_store %arg6[%c0_25, %c0_26], %51 {strides = array<i32>} : memref<8x32xf32, #tpu.memory_space<vmem>>, vector<8x32xf32>,
    return
  }
  func.func @transform_0(%arg0: i32) -> (i32, i32) {
    %c0_i32 = arith.constant 0 : i32
    %c0_i32_0 = arith.constant 0 : i32
    %c0_i32_1 = arith.constant 0 : i32
    return %c0_i32, %c0_i32_0 : i32, i32
  }
  func.func @transform_1(%arg0: i32) -> (i32, i32) {
    %c0_i32 = arith.constant 0 : i32
    %c0_i32_0 = arith.constant 0 : i32
    return %arg0, %c0_i32 : i32, i32
  }
  func.func @transform_2(%arg0: i32) -> (i32, i32) {
    %c0_i32 = arith.constant 0 : i32
    %c0_i32_0 = arith.constant 0 : i32
    return %arg0, %c0_i32 : i32, i32
  }
  func.func @transform_3(%arg0: i32) -> (i32, i32) {
    %c0_i32 = arith.constant 0 : i32
    %c0_i32_0 = arith.constant 0 : i32
    return %arg0, %c0_i32 : i32, i32
  }
  func.func @transform_4(%arg0: i32) -> (i32, i32) {
    %c0_i32 = arith.constant 0 : i32
    %c0_i32_0 = arith.constant 0 : i32
    return %arg0, %c0_i32 : i32, i32
  }
  func.func @transform_5(%arg0: i32) -> (i32, i32) {
    %c0_i32 = arith.constant 0 : i32
    %c0_i32_0 = arith.constant 0 : i32
    return %arg0, %c0_i32 : i32, i32
  }
}

</mosaic_0001>

<llo_original>
// kernel: tpu_custom_call.1
$region0: #{tpu_custom_call.1}
  #allocation0 [shape = 'u32[]', space=smem, size = 0x4, offset = 0x4, fixed_abs, tag = 'smem constant byte address 0x4 - core index']
  #allocation1 [shape = 'u32[144,128]{1,0:T(1,128)}', space=vmem, size = 0x12000, scoped, tag = 'internal scratch']
  %s0 = inlined_call_operand.vmem [shape: f32[32,1], index: 0, kind: input, shape index: {}]
  %s1 = inlined_call_operand.vmem [shape: f32[16,32], index: 1, kind: input, shape index: {}]
  %s2 = inlined_call_operand.vmem [shape: f32[16,32], index: 2, kind: input, shape index: {}]
  %s3 = inlined_call_operand.hbm [shape: f32[16,32], index: 3, kind: input, shape index: {}]
  %s4 = inlined_call_operand.hbm [shape: f32[16,32], index: 4, kind: input, shape index: {}]
  %s5 = inlined_call_operand.hbm [shape: f32[16,32], index: 5, kind: output, shape index: {}]
  %s6 = sld [smem:[#allocation0]]
  $region61: #{tpu_custom_call.1} parent=0
    _
  %s8 = ssub.s32 1, %s6
  %s9 = scalar_select 0, %s8, %s6
  $region1: #{tpu_custom_call.1} parent=0
    #allocation2 [shape = 'u8[8192]{0}', space=vmem, size = 0x2000, scoped, tag = 'input window, operand 3']
    #allocation3 [shape = 's32[2]{0}', space=sflag, size = 0x8, scoped, tag = 'scoped memory for tpu_custom_call.1']
    #allocation4 [shape = 's32[2]{0}', space=sflag, size = 0x8, scoped, tag = 'scoped memory for tpu_custom_call.1']
    #allocation5 [shape = 'u8[8192]{0}', space=vmem, size = 0x2000, scoped, tag = 'input window, operand 4']
    #allocation6 [shape = 's32[2]{0}', space=sflag, size = 0x8, scoped, tag = 'scoped memory for tpu_custom_call.1']
    #allocation7 [shape = 'u8[8192]{0}', space=vmem, size = 0x2000, scoped, tag = 'output window, operand 0']
    %10 = vsyncpa [#allocation3], 0
    %s11 = scalar_lea.sflag [#allocation3], 1
    %12 = vsyncpa %s11, 0
    %13 = vsyncpa [#allocation6], 0
    %s14 = scalar_lea.sflag [#allocation6], 1
    %15 = vsyncpa %s14, 0
    %16 = vsyncpa [#allocation4], 0
    %s17 = scalar_lea.sflag [#allocation4], 1
    %18 = vsyncpa %s17, 0
    loop: start=0, step=1, limit=4
    $region2: #{tpu_custom_call.1} parent=1 // loop_pre_header
      _
    $region3: #{tpu_custom_call.1} parent=1 // loop_header
      %s20 = sphi 0, %s24
      %p21 = scmp.ge.s32.totalorder %s20, 4
      %s28 = sphi 0, %s28
      %s30 = sphi 0, %s28
      %s31 = sphi 0, %s30
      %s45 = sphi 0, %s31
      %s51 = sphi 0, %s53
      %s54 = sphi 0, %s51
      %s55 = sphi 0, %s54
      %s71 = sphi 0, %s55
      %s77 = sphi 0, %s79
      %s80 = sphi 0, %s77
      %s81 = sphi 0, %s80
      %s97 = sphi 0, %s81
      %s103 = sphi 0, %s105
      %s106 = sphi 0, %s103
      %s107 = sphi 0, %s106
      %s123 = sphi 0, %s107
      %s129 = sphi 0, %s131
      %s132 = sphi 0, %s129
      %s133 = sphi 0, %s132
      %s149 = sphi 0, %s133
      %s155 = sphi 0, %s157
      %s158 = sphi 0, %s155
      %s159 = sphi 0, %s158
      %s175 = sphi 0, %s159
    $region4: #{tpu_custom_call.1} parent=1 // loop_header_branch
      %23 = sbr.rel (%p21) target = $region8
    $region5: #{tpu_custom_call.1} parent=1 // loop_body
      %s25 = ssub.s32 %s20, 1
      %s26 = ssub.s32 %s20, 2
      %s27 = sadd.s32 %s20, 1
      %s29 = sadd.s32 %s28, 1
      %p32 = scmp.eq.s32.totalorder %s20, 1
      %p33 = scmp.ne.s32.totalorder %s28, %s30
      %p34 = scmp.eq.s32.totalorder %s20, 0
      %p35 = por %p33, %p34
      %p36 = scmp.ne.s32.totalorder %s28, %s30
      %p37 = scmp.eq.s32.totalorder %s25, 1
      %p38 = por %p36, %p37
      %p39 = scmp.ne.s32.totalorder %s30, %s31
      %p40 = scmp.eq.s32.totalorder %s25, 0
      %p41 = por %p39, %p40
      %p42 = scmp.ne.s32.totalorder %s30, %s31
      %p43 = scmp.eq.s32.totalorder %s26, 1
      %p44 = por %p42, %p43
      %p46 = scmp.ne.s32.totalorder %s31, %s45
      %p47 = scmp.eq.s32.totalorder %s26, 0
      %p48 = por %p46, %p47
      %s49 = ssub.s32 %s20, %s27
      %p50 = scmp.eq.s32.totalorder %s49, 0
      %s52 = sadd.s32 %s51, 1
      %s53 = scalar_select %p50, %s51, %s52
      %p56 = pneg %p50
      %p57 = scmp.eq.s32.totalorder %s20, 1
      %p58 = por %p56, %p57
      %p59 = scmp.ne.s32.totalorder %s51, %s54
      %p60 = scmp.eq.s32.totalorder %s20, 0
      %p61 = por %p59, %p60
      %p62 = scmp.ne.s32.totalorder %s51, %s54
      %p63 = scmp.eq.s32.totalorder %s25, 1
      %p64 = por %p62, %p63
      %p65 = scmp.ne.s32.totalorder %s54, %s55
      %p66 = scmp.eq.s32.totalorder %s25, 0
      %p67 = por %p65, %p66
      %p68 = scmp.ne.s32.totalorder %s54, %s55
      %p69 = scmp.eq.s32.totalorder %s26, 1
      %p70 = por %p68, %p69
      %p72 = scmp.ne.s32.totalorder %s55, %s71
      %p73 = scmp.eq.s32.totalorder %s26, 0
      %p74 = por %p72, %p73
      %s75 = ssub.s32 %s20, %s27
      %p76 = scmp.eq.s32.totalorder %s75, 0
      %s78 = sadd.s32 %s77, 1
      %s79 = scalar_select %p76, %s77, %s78
      %p82 = pneg %p76
      %p83 = scmp.eq.s32.totalorder %s20, 1
      %p84 = por %p82, %p83
      %p85 = scmp.ne.s32.totalorder %s77, %s80
      %p86 = scmp.eq.s32.totalorder %s20, 0
      %p87 = por %p85, %p86
      %p88 = scmp.ne.s32.totalorder %s77, %s80
      %p89 = scmp.eq.s32.totalorder %s25, 1
      %p90 = por %p88, %p89
      %p91 = scmp.ne.s32.totalorder %s80, %s81
      %p92 = scmp.eq.s32.totalorder %s25, 0
      %p93 = por %p91, %p92
      %p94 = scmp.ne.s32.totalorder %s80, %s81
      %p95 = scmp.eq.s32.totalorder %s26, 1
      %p96 = por %p94, %p95
      %p98 = scmp.ne.s32.totalorder %s81, %s97
      %p99 = scmp.eq.s32.totalorder %s26, 0
      %p100 = por %p98, %p99
      %s101 = ssub.s32 %s20, %s27
      %p102 = scmp.eq.s32.totalorder %s101, 0
      %s104 = sadd.s32 %s103, 1
      %s105 = scalar_select %p102, %s103, %s104
      %p108 = pneg %p102
      %p109 = scmp.eq.s32.totalorder %s20, 1
      %p110 = por %p108, %p109
      %p111 = scmp.ne.s32.totalorder %s103, %s106
      %p112 = scmp.eq.s32.totalorder %s20, 0
      %p113 = por %p111, %p112
      %p114 = scmp.ne.s32.totalorder %s103, %s106
      %p115 = scmp.eq.s32.totalorder %s25, 1
      %p116 = por %p114, %p115
      %p117 = scmp.ne.s32.totalorder %s106, %s107
      %p118 = scmp.eq.s32.totalorder %s25, 0
      %p119 = por %p117, %p118
      %p120 = scmp.ne.s32.totalorder %s106, %s107
      %p121 = scmp.eq.s32.totalorder %s26, 1
      %p122 = por %p120, %p121
      %p124 = scmp.ne.s32.totalorder %s107, %s123
      %p125 = scmp.eq.s32.totalorder %s26, 0
      %p126 = por %p124, %p125
      %s127 = ssub.s32 %s20, %s27
      %p128 = scmp.eq.s32.totalorder %s127, 0
      %s130 = sadd.s32 %s129, 1
      %s131 = scalar_select %p128, %s129, %s130
      %p134 = pneg %p128
      %p135 = scmp.eq.s32.totalorder %s20, 1
      %p136 = por %p134, %p135
      %p137 = scmp.ne.s32.totalorder %s129, %s132
      %p138 = scmp.eq.s32.totalorder %s20, 0
      %p139 = por %p137, %p138
      %p140 = scmp.ne.s32.totalorder %s129, %s132
      %p141 = scmp.eq.s32.totalorder %s25, 1
      %p142 = por %p140, %p141
      %p143 = scmp.ne.s32.totalorder %s132, %s133
      %p144 = scmp.eq.s32.totalorder %s25, 0
      %p145 = por %p143, %p144
      %p146 = scmp.ne.s32.totalorder %s132, %s133
      %p147 = scmp.eq.s32.totalorder %s26, 1
      %p148 = por %p146, %p147
      %p150 = scmp.ne.s32.totalorder %s133, %s149
      %p151 = scmp.eq.s32.totalorder %s26, 0
      %p152 = por %p150, %p151
      %s153 = ssub.s32 %s20, %s27
      %p154 = scmp.eq.s32.totalorder %s153, 0
      %s156 = sadd.s32 %s155, 1
      %s157 = scalar_select %p154, %s155, %s156
      %p160 = pneg %p154
      %p161 = scmp.eq.s32.totalorder %s20, 1
      %p162 = por %p160, %p161
      %p163 = scmp.ne.s32.totalorder %s155, %s158
      %p164 = scmp.eq.s32.totalorder %s20, 0
      %p165 = por %p163, %p164
      %p166 = scmp.ne.s32.totalorder %s155, %s158
      %p167 = scmp.eq.s32.totalorder %s25, 1
      %p168 = por %p166, %p167
      %p169 = scmp.ne.s32.totalorder %s158, %s159
      %p170 = scmp.eq.s32.totalorder %s25, 0
      %p171 = por %p169, %p170
      %p172 = scmp.ne.s32.totalorder %s158, %s159
      %p173 = scmp.eq.s32.totalorder %s26, 1
      %p174 = por %p172, %p173
      %p176 = scmp.ne.s32.totalorder %s159, %s175
      %p177 = scmp.eq.s32.totalorder %s26, 0
      %p178 = por %p176, %p177
      %p179 = scmp.le.s32.totalorder 1, %s20
      %p180 = scmp.lt.s32.totalorder %s20, 3
      %p181 = pnand %p179, %p180
      %p182 = pneg %p181
      // Predicated region
      $region9: #{tpu_custom_call.1} parent=5 // pred_check
        _
      $region10: #{tpu_custom_call.1} parent=5 // pred_check_branch
        %184 = sbr.rel (%p181) target = $region12
      $region11: #{tpu_custom_call.1} parent=5 // pred_region
        %s185 = ssub.s32 %s20, 1
        // Predicated region
        $region13: #{tpu_custom_call.1} parent=11 // pred_check
          %p186 = pneg %p41
        $region14: #{tpu_custom_call.1} parent=11 // pred_check_branch
          %188 = sbr.rel (%p186) target = $region16
        $region15: #{tpu_custom_call.1} parent=11 // pred_region
          _
        $region16: #{tpu_custom_call.1} parent=11 // pred_fallthru
          _
      $region12: #{tpu_custom_call.1} parent=5 // pred_fallthru
        _
      %p189 = scmp.lt.s32.totalorder %s20, 2
      // Predicated region
      $region17: #{tpu_custom_call.1} parent=5 // pred_check
        %p190 = pneg %p189
      $region18: #{tpu_custom_call.1} parent=5 // pred_check_branch
        %192 = sbr.rel (%p190) target = $region20
      $region19: #{tpu_custom_call.1} parent=5 // pred_region
        // Predicated region
        $region21: #{tpu_custom_call.1} parent=19 // pred_check
          %p193 = pneg %p61
        $region22: #{tpu_custom_call.1} parent=19 // pred_check_branch
          %195 = sbr.rel (%p193) target = $region24
        $region23: #{tpu_custom_call.1} parent=19 // pred_region
          %p196 = scmp.lt.s32.totalorder %s20, 1
          %s197 = scalar_select %p196, %s20, 1
          %s198 = smul.addr %s197, 8
          %s199 = scalar_lea.vmem %s1, %s198
        $region24: #{tpu_custom_call.1} parent=19 // pred_fallthru
          _
        // Predicated region
        $region25: #{tpu_custom_call.1} parent=19 // pred_check
          %p200 = pneg %p87
        $region26: #{tpu_custom_call.1} parent=19 // pred_check_branch
          %202 = sbr.rel (%p200) target = $region28
        $region27: #{tpu_custom_call.1} parent=19 // pred_region
          %p203 = scmp.lt.s32.totalorder %s20, 1
          %s204 = scalar_select %p203, %s20, 1
          %s205 = smul.addr %s204, 8
          %s206 = scalar_lea.vmem %s2, %s205
        $region28: #{tpu_custom_call.1} parent=19 // pred_fallthru
          _
        // Predicated region
        $region29: #{tpu_custom_call.1} parent=19 // pred_check
          %p207 = pneg %p113
        $region30: #{tpu_custom_call.1} parent=19 // pred_check_branch
          %209 = sbr.rel (%p207) target = $region32
        $region31: #{tpu_custom_call.1} parent=19 // pred_region
          %s210 = sand.u32 %s103, 1
          %s211 = scalar_lea.sflag [#allocation3], %s210
          %s212 = sand.u32 %s103, 1
          %s213 = smul.addr %s212, 8
          %s214 = scalar_lea.vmem [#allocation2], %s213
          %s216 = ssub.s32 128, 128
          %217 = vsyncadd %s211, %s216
          %s218 = smul.addr %s20, 128
          %s219 = scalar_lea.hbm %s3, %s218
          %s221 = sshll.u32 %s214, 4
          %s222 = int_to_ptr.vmem [resolvable:$true] %s221
          %224 = dma.hbm_to_vmem [thread:$0]  %s219, 128, %s222, %s211
        $region32: #{tpu_custom_call.1} parent=19 // pred_fallthru
          _
        // Predicated region
        $region33: #{tpu_custom_call.1} parent=19 // pred_check
          %p225 = pneg %p139
        $region34: #{tpu_custom_call.1} parent=19 // pred_check_branch
          %227 = sbr.rel (%p225) target = $region36
        $region35: #{tpu_custom_call.1} parent=19 // pred_region
          %s228 = sand.u32 %s129, 1
          %s229 = scalar_lea.sflag [#allocation6], %s228
          %s230 = sand.u32 %s129, 1
          %s231 = smul.addr %s230, 8
          %s232 = scalar_lea.vmem [#allocation5], %s231
          %s234 = ssub.s32 128, 128
          %235 = vsyncadd %s229, %s234
          %s236 = smul.addr %s20, 128
          %s237 = scalar_lea.hbm %s4, %s236
          %s239 = sshll.u32 %s232, 4
          %s240 = int_to_ptr.vmem [resolvable:$true] %s239
          %242 = dma.hbm_to_vmem [thread:$0]  %s237, 128, %s240, %s229
        $region36: #{tpu_custom_call.1} parent=19 // pred_fallthru
          _
      $region20: #{tpu_custom_call.1} parent=5 // pred_fallthru
        _
      %p243 = scmp.le.s32.totalorder 1, %s20
      %p244 = scmp.lt.s32.totalorder %s20, 3
      %p245 = pnand %p243, %p244
      %p246 = pneg %p245
      // Predicated region
      $region37: #{tpu_custom_call.1} parent=5 // pred_check
        _
      $region38: #{tpu_custom_call.1} parent=5 // pred_check_branch
        %248 = sbr.rel (%p245) target = $region40
      $region39: #{tpu_custom_call.1} parent=5 // pred_region
        %s249 = ssub.s32 %s20, 1
        %s250 = sand.u32 %s106, 1
        %s251 = scalar_lea.sflag [#allocation3], %s250
        %s252 = sand.u32 %s106, 1
        %s253 = smul.addr %s252, 8
        %s254 = scalar_lea.vmem [#allocation2], %s253
        // Predicated region
        $region41: #{tpu_custom_call.1} parent=39 // pred_check
          %p255 = pneg %p119
        $region42: #{tpu_custom_call.1} parent=39 // pred_check_branch
          %257 = sbr.rel (%p255) target = $region44
        $region43: #{tpu_custom_call.1} parent=39 // pred_region
          %258 = dma.done %s251, 128
        $region44: #{tpu_custom_call.1} parent=39 // pred_fallthru
          _
        %s259 = sand.u32 %s132, 1
        %s260 = scalar_lea.sflag [#allocation6], %s259
        %s261 = sand.u32 %s132, 1
        %s262 = smul.addr %s261, 8
        %s263 = scalar_lea.vmem [#allocation5], %s262
        // Predicated region
        $region45: #{tpu_custom_call.1} parent=39 // pred_check
          %p264 = pneg %p145
        $region46: #{tpu_custom_call.1} parent=39 // pred_check_branch
          %266 = sbr.rel (%p264) target = $region48
        $region47: #{tpu_custom_call.1} parent=39 // pred_region
          %267 = dma.done %s260, 128
        $region48: #{tpu_custom_call.1} parent=39 // pred_fallthru
          _
        %p268 = pneg %p41
        %p269 = pneg %p38
        %p270 = scmp.lt.s32.totalorder %s25, 1
        %s271 = scalar_select %p270, %s25, 1
        %s272 = smul.addr %s271, 8
        %s273 = scalar_lea.vmem %s1, %s272
        %p274 = pneg %p67
        %p275 = pneg %p64
        %p276 = scmp.lt.s32.totalorder %s25, 1
        %s277 = scalar_select %p276, %s25, 1
        %s278 = smul.addr %s277, 8
        %s279 = scalar_lea.vmem %s2, %s278
        %p280 = pneg %p93
        %p281 = pneg %p90
        %s282 = sand.u32 %s106, 1
        %s283 = scalar_lea.sflag [#allocation3], %s282
        %s284 = sand.u32 %s106, 1
        %s285 = smul.addr %s284, 8
        %s286 = scalar_lea.vmem [#allocation2], %s285
        %p287 = pneg %p119
        %p288 = pneg %p116
        %s289 = sand.u32 %s132, 1
        %s290 = scalar_lea.sflag [#allocation6], %s289
        %s291 = sand.u32 %s132, 1
        %s292 = smul.addr %s291, 8
        %s293 = scalar_lea.vmem [#allocation5], %s292
        %p294 = pneg %p145
        %p295 = pneg %p142
        %p296 = pneg %p171
        %p297 = pneg %p168
        %s298 = sand.u32 %s158, 1
        %s299 = scalar_lea.sflag [#allocation4], %s298
        %s300 = sand.u32 %s158, 1
        %s301 = smul.addr %s300, 8
        %s302 = scalar_lea.vmem [#allocation7], %s301
        %p303 = scmp.lt.s32.totalorder %s25, 1
        %s304 = scalar_select %p303, %s25, 1
        %s305 = smul.addr %s304, 8
        %s306 = scalar_lea.vmem %s1, %s305
        %p307 = scmp.lt.s32.totalorder %s25, 1
        %s308 = scalar_select %p307, %s25, 1
        %s309 = smul.addr %s308, 8
        %s310 = scalar_lea.vmem %s2, %s309
        %v311 = vld [vmem:[%s0] sm:$0xff]
        %v312 = vld [vmem:[%s0 + $0x8] sm:$0xff]
        %v313 = vld [vmem:[%s0 + $0x10] sm:$0xff]
        %v314 = vld [vmem:[%s0 + $0x18] sm:$0xff]
        %v315 = vld [vmem:[%s306] sm:$0xff]
        %vm316 = vcmask 261120
        %v318 = vsel %vm316, %v315, 0
        %320 = vmatprep.subr.mxu0 0.0
        %321 = vmatpush1.msra.mxu0 0.0
        %322 = vmatprep.subr.mxu0 0.0
        %323 = vmatpush1.msra.mxu0 0.0
        %324 = vmatprep.subr.mxu0 0.0
        %325 = vmatpush1.msra.mxu0 0.0
        %326 = vmatprep.subr.mxu0 0.0
        %327 = vmatpush1.msra.mxu0 0.0
        %328 = vmatprep.subr.mxu0 0.0
        %329 = vmatpush1.msra.mxu0 0.0
        %330 = vmatprep.subr.mxu0 0.0
        %331 = vmatpush1.msra.mxu0 0.0
        %332 = vmatprep.subr.mxu0 0.0
        %333 = vmatpush1.msra.mxu0 0.0
        %334 = vmatprep.subr.mxu0 0.0
        %335 = vmatpush1.msra.mxu0 0.0
        %336 = vmatprep.subr.mxu0 0.0
        %337 = vmatpush1.msra.mxu0 0.0
        %338 = vmatprep.subr.mxu0 0.0
        %339 = vmatpush1.msra.mxu0 0.0
        %340 = vmatprep.subr.mxu0 0.0
        %341 = vmatpush1.msra.mxu0 0.0
        %342 = vmatprep.subr.mxu0 0.0
        %343 = vmatpush1.msra.mxu0 0.0
        %344 = vmatprep.subr.mxu0 0.0
        %v345 = vand.u32 %v314, 4294901760
        %346 = vmatpush1.msra.mxu0 %v345
        %347 = vmatprep.subr.mxu0 0.0
        %v348 = vand.u32 %v313, 4294901760
        %349 = vmatpush1.msra.mxu0 %v348
        %350 = vmatprep.subr.mxu0 0.0
        %v351 = vand.u32 %v312, 4294901760
        %352 = vmatpush1.msra.mxu0 %v351
        %353 = vmatprep.subr.mxu0 0.0
        %v354 = vand.u32 %v311, 4294901760
        %355 = vmatpush1.msra.mxu0 %v354
        %356 = vmatprep.subr.mxu0 0.0
        %357 = vmatpush2.msra.mxu0 0.0
        %358 = vmatprep.subr.mxu0 0.0
        %359 = vmatpush2.msra.mxu0 0.0
        %360 = vmatprep.subr.mxu0 0.0
        %361 = vmatpush2.msra.mxu0 0.0
        %362 = vmatprep.subr.mxu0 0.0
        %363 = vmatpush2.msra.mxu0 0.0
        %364 = vmatprep.subr.mxu0 0.0
        %365 = vmatpush2.msra.mxu0 0.0
        %366 = vmatprep.subr.mxu0 0.0
        %367 = vmatpush2.msra.mxu0 0.0
        %368 = vmatprep.subr.mxu0 0.0
        %369 = vmatpush2.msra.mxu0 0.0
        %370 = vmatprep.subr.mxu0 0.0
        %371 = vmatpush2.msra.mxu0 0.0
        %372 = vmatprep.subr.mxu0 0.0
        %373 = vmatpush2.msra.mxu0 0.0
        %374 = vmatprep.subr.mxu0 0.0
        %375 = vmatpush2.msra.mxu0 0.0
        %376 = vmatprep.subr.mxu0 0.0
        %377 = vmatpush2.msra.mxu0 0.0
        %378 = vmatprep.subr.mxu0 0.0
        %379 = vmatpush2.msra.mxu0 0.0
        %380 = vmatprep.subr.mxu0 0.0
        %381 = vmatpush2.msra.mxu0 0.0
        %382 = vmatprep.subr.mxu0 0.0
        %383 = vmatpush2.msra.mxu0 0.0
        %384 = vmatprep.subr.mxu0 0.0
        %385 = vmatpush2.msra.mxu0 0.0
        %386 = vmatprep.subr.mxu0 0.0
        %387 = vmatpush2.msra.mxu0 0.0
        %388 = vmatprep.mubr.f32.mxu0 0.0
        %v389 = vand.u32 %v318, 4294901760
        %v390 = vsub.f32 %v318, %v389
        %v391 = vand.u32 %v390, 4294901760
        %v392 = vsub.f32 %v390, %v391
        %v393 = vand.u32 %v392, 4294901760
        %394 = vmatmul.mubr.f32.gmra.mxu0 %v393
        %v395 = vpop.f32.mrf.mxu0
        %v396 = vadd.f32 0.0, %v395
        %v397 = vpop.f32.mrf.mxu0
        %398 = vdwg.mxu0
        %399 = vmatprep.subr.mxu0 0.0
        %400 = vmatpush1.msra.mxu0 0.0
        %401 = vmatprep.subr.mxu0 0.0
        %402 = vmatpush1.msra.mxu0 0.0
        %403 = vmatprep.subr.mxu0 0.0
        %404 = vmatpush1.msra.mxu0 0.0
        %405 = vmatprep.subr.mxu0 0.0
        %406 = vmatpush1.msra.mxu0 0.0
        %407 = vmatprep.subr.mxu0 0.0
        %408 = vmatpush1.msra.mxu0 0.0
        %409 = vmatprep.subr.mxu0 0.0
        %410 = vmatpush1.msra.mxu0 0.0
        %411 = vmatprep.subr.mxu0 0.0
        %412 = vmatpush1.msra.mxu0 0.0
        %413 = vmatprep.subr.mxu0 0.0
        %414 = vmatpush1.msra.mxu0 0.0
        %415 = vmatprep.subr.mxu0 0.0
        %416 = vmatpush1.msra.mxu0 0.0
        %417 = vmatprep.subr.mxu0 0.0
        %418 = vmatpush1.msra.mxu0 0.0
        %419 = vmatprep.subr.mxu0 0.0
        %420 = vmatpush1.msra.mxu0 0.0
        %421 = vmatprep.subr.mxu0 0.0
        %422 = vmatpush1.msra.mxu0 0.0
        %423 = vmatprep.subr.mxu0 0.0
        %v424 = vand.u32 %v314, 4294901760
        %v425 = vsub.f32 %v314, %v424
        %v426 = vand.u32 %v425, 4294901760
        %v427 = vsub.f32 %v425, %v426
        %v428 = vand.u32 %v427, 4294901760
        %429 = vmatpush1.msra.mxu0 %v428
        %430 = vmatprep.subr.mxu0 0.0
        %v431 = vand.u32 %v313, 4294901760
        %v432 = vsub.f32 %v313, %v431
        %v433 = vand.u32 %v432, 4294901760
        %v434 = vsub.f32 %v432, %v433
        %v435 = vand.u32 %v434, 4294901760
        %436 = vmatpush1.msra.mxu0 %v435
        %437 = vmatprep.subr.mxu0 0.0
        %v438 = vand.u32 %v312, 4294901760
        %v439 = vsub.f32 %v312, %v438
        %v440 = vand.u32 %v439, 4294901760
        %v441 = vsub.f32 %v439, %v440
        %v442 = vand.u32 %v441, 4294901760
        %443 = vmatpush1.msra.mxu0 %v442
        %444 = vmatprep.subr.mxu0 0.0
        %v445 = vand.u32 %v311, 4294901760
        %v446 = vsub.f32 %v311, %v445
        %v447 = vand.u32 %v446, 4294901760
        %v448 = vsub.f32 %v446, %v447
        %v449 = vand.u32 %v448, 4294901760
        %450 = vmatpush1.msra.mxu0 %v449
        %451 = vmatprep.subr.mxu0 0.0
        %452 = vmatpush2.msra.mxu0 0.0
        %453 = vmatprep.subr.mxu0 0.0
        %454 = vmatpush2.msra.mxu0 0.0
        %455 = vmatprep.subr.mxu0 0.0
        %456 = vmatpush2.msra.mxu0 0.0
        %457 = vmatprep.subr.mxu0 0.0
        %458 = vmatpush2.msra.mxu0 0.0
        %459 = vmatprep.subr.mxu0 0.0
        %460 = vmatpush2.msra.mxu0 0.0
        %461 = vmatprep.subr.mxu0 0.0
        %462 = vmatpush2.msra.mxu0 0.0
        %463 = vmatprep.subr.mxu0 0.0
        %464 = vmatpush2.msra.mxu0 0.0
        %465 = vmatprep.subr.mxu0 0.0
        %466 = vmatpush2.msra.mxu0 0.0
        %467 = vmatprep.subr.mxu0 0.0
        %468 = vmatpush2.msra.mxu0 0.0
        %469 = vmatprep.subr.mxu0 0.0
        %470 = vmatpush2.msra.mxu0 0.0
        %471 = vmatprep.subr.mxu0 0.0
        %472 = vmatpush2.msra.mxu0 0.0
        %473 = vmatprep.subr.mxu0 0.0
        %474 = vmatpush2.msra.mxu0 0.0
        %475 = vmatprep.subr.mxu0 0.0
        %476 = vmatpush2.msra.mxu0 0.0
        %477 = vmatprep.subr.mxu0 0.0
        %478 = vmatpush2.msra.mxu0 0.0
        %479 = vmatprep.subr.mxu0 0.0
        %480 = vmatpush2.msra.mxu0 0.0
        %481 = vmatprep.subr.mxu0 0.0
        %482 = vmatpush2.msra.mxu0 0.0
        %483 = vmatprep.mubr.f32.mxu0 0.0
        %v484 = vand.u32 %v318, 4294901760
        %485 = vmatmul.mubr.f32.gmra.mxu0 %v484
        %v486 = vpop.f32.mrf.mxu0
        %v487 = vadd.f32 %v396, %v486
        %v488 = vpop.f32.mrf.mxu0
        %489 = vdwg.mxu0
        %490 = vmatprep.subr.mxu0 0.0
        %491 = vmatpush1.msra.mxu0 0.0
        %492 = vmatprep.subr.mxu0 0.0
        %493 = vmatpush1.msra.mxu0 0.0
        %494 = vmatprep.subr.mxu0 0.0
        %495 = vmatpush1.msra.mxu0 0.0
        %496 = vmatprep.subr.mxu0 0.0
        %497 = vmatpush1.msra.mxu0 0.0
        %498 = vmatprep.subr.mxu0 0.0
        %499 = vmatpush1.msra.mxu0 0.0
        %500 = vmatprep.subr.mxu0 0.0
        %501 = vmatpush1.msra.mxu0 0.0
        %502 = vmatprep.subr.mxu0 0.0
        %503 = vmatpush1.msra.mxu0 0.0
        %504 = vmatprep.subr.mxu0 0.0
        %505 = vmatpush1.msra.mxu0 0.0
        %506 = vmatprep.subr.mxu0 0.0
        %507 = vmatpush1.msra.mxu0 0.0
        %508 = vmatprep.subr.mxu0 0.0
        %509 = vmatpush1.msra.mxu0 0.0
        %510 = vmatprep.subr.mxu0 0.0
        %511 = vmatpush1.msra.mxu0 0.0
        %512 = vmatprep.subr.mxu0 0.0
        %513 = vmatpush1.msra.mxu0 0.0
        %514 = vmatprep.subr.mxu0 0.0
        %v515 = vand.u32 %v314, 4294901760
        %v516 = vsub.f32 %v314, %v515
        %517 = vmatpush1.msra.mxu0 %v516
        %518 = vmatprep.subr.mxu0 0.0
        %v519 = vand.u32 %v313, 4294901760
        %v520 = vsub.f32 %v313, %v519
        %521 = vmatpush1.msra.mxu0 %v520
        %522 = vmatprep.subr.mxu0 0.0
        %v523 = vand.u32 %v312, 4294901760
        %v524 = vsub.f32 %v312, %v523
        %525 = vmatpush1.msra.mxu0 %v524
        %526 = vmatprep.subr.mxu0 0.0
        %v527 = vand.u32 %v311, 4294901760
        %v528 = vsub.f32 %v311, %v527
        %529 = vmatpush1.msra.mxu0 %v528
        %530 = vmatprep.subr.mxu0 0.0
        %531 = vmatpush2.msra.mxu0 0.0
        %532 = vmatprep.subr.mxu0 0.0
        %533 = vmatpush2.msra.mxu0 0.0
        %534 = vmatprep.subr.mxu0 0.0
        %535 = vmatpush2.msra.mxu0 0.0
        %536 = vmatprep.subr.mxu0 0.0
        %537 = vmatpush2.msra.mxu0 0.0
        %538 = vmatprep.subr.mxu0 0.0
        %539 = vmatpush2.msra.mxu0 0.0
        %540 = vmatprep.subr.mxu0 0.0
        %541 = vmatpush2.msra.mxu0 0.0
        %542 = vmatprep.subr.mxu0 0.0
        %543 = vmatpush2.msra.mxu0 0.0
        %544 = vmatprep.subr.mxu0 0.0
        %545 = vmatpush2.msra.mxu0 0.0
        %546 = vmatprep.subr.mxu0 0.0
        %547 = vmatpush2.msra.mxu0 0.0
        %548 = vmatprep.subr.mxu0 0.0
        %549 = vmatpush2.msra.mxu0 0.0
        %550 = vmatprep.subr.mxu0 0.0
        %551 = vmatpush2.msra.mxu0 0.0
        %552 = vmatprep.subr.mxu0 0.0
        %553 = vmatpush2.msra.mxu0 0.0
        %554 = vmatprep.subr.mxu0 0.0
        %555 = vmatpush2.msra.mxu0 0.0
        %556 = vmatprep.subr.mxu0 0.0
        %557 = vmatpush2.msra.mxu0 0.0
        %558 = vmatprep.subr.mxu0 0.0
        %559 = vmatpush2.msra.mxu0 0.0
        %560 = vmatprep.subr.mxu0 0.0
        %561 = vmatpush2.msra.mxu0 0.0
        %562 = vmatprep.mubr.f32.mxu0 0.0
        %v563 = vand.u32 %v318, 4294901760
        %v564 = vsub.f32 %v318, %v563
        %565 = vmatmul.mubr.f32.gmra.mxu0 %v564
        %v566 = vpop.f32.mrf.mxu0
        %v567 = vadd.f32 %v487, %v566
        %v568 = vpop.f32.mrf.mxu0
        %569 = vdwg.mxu0
        %570 = vmatprep.subr.mxu0 0.0
        %571 = vmatpush1.msra.mxu0 0.0
        %572 = vmatprep.subr.mxu0 0.0
        %573 = vmatpush1.msra.mxu0 0.0
        %574 = vmatprep.subr.mxu0 0.0
        %575 = vmatpush1.msra.mxu0 0.0
        %576 = vmatprep.subr.mxu0 0.0
        %577 = vmatpush1.msra.mxu0 0.0
        %578 = vmatprep.subr.mxu0 0.0
        %579 = vmatpush1.msra.mxu0 0.0
        %580 = vmatprep.subr.mxu0 0.0
        %581 = vmatpush1.msra.mxu0 0.0
        %582 = vmatprep.subr.mxu0 0.0
        %583 = vmatpush1.msra.mxu0 0.0
        %584 = vmatprep.subr.mxu0 0.0
        %585 = vmatpush1.msra.mxu0 0.0
        %586 = vmatprep.subr.mxu0 0.0
        %587 = vmatpush1.msra.mxu0 0.0
        %588 = vmatprep.subr.mxu0 0.0
        %589 = vmatpush1.msra.mxu0 0.0
        %590 = vmatprep.subr.mxu0 0.0
        %591 = vmatpush1.msra.mxu0 0.0
        %592 = vmatprep.subr.mxu0 0.0
        %593 = vmatpush1.msra.mxu0 0.0
        %594 = vmatprep.subr.mxu0 0.0
        %v595 = vand.u32 %v314, 4294901760
        %596 = vmatpush1.msra.mxu0 %v595
        %597 = vmatprep.subr.mxu0 0.0
        %v598 = vand.u32 %v313, 4294901760
        %599 = vmatpush1.msra.mxu0 %v598
        %600 = vmatprep.subr.mxu0 0.0
        %v601 = vand.u32 %v312, 4294901760
        %602 = vmatpush1.msra.mxu0 %v601
        %603 = vmatprep.subr.mxu0 0.0
        %v604 = vand.u32 %v311, 4294901760
        %605 = vmatpush1.msra.mxu0 %v604
        %606 = vmatprep.subr.mxu0 0.0
        %607 = vmatpush2.msra.mxu0 0.0
        %608 = vmatprep.subr.mxu0 0.0
        %609 = vmatpush2.msra.mxu0 0.0
        %610 = vmatprep.subr.mxu0 0.0
        %611 = vmatpush2.msra.mxu0 0.0
        %612 = vmatprep.subr.mxu0 0.0
        %613 = vmatpush2.msra.mxu0 0.0
        %614 = vmatprep.subr.mxu0 0.0
        %615 = vmatpush2.msra.mxu0 0.0
        %616 = vmatprep.subr.mxu0 0.0
        %617 = vmatpush2.msra.mxu0 0.0
        %618 = vmatprep.subr.mxu0 0.0
        %619 = vmatpush2.msra.mxu0 0.0
        %620 = vmatprep.subr.mxu0 0.0
        %621 = vmatpush2.msra.mxu0 0.0
        %622 = vmatprep.subr.mxu0 0.0
        %623 = vmatpush2.msra.mxu0 0.0
        %624 = vmatprep.subr.mxu0 0.0
        %625 = vmatpush2.msra.mxu0 0.0
        %626 = vmatprep.subr.mxu0 0.0
        %627 = vmatpush2.msra.mxu0 0.0
        %628 = vmatprep.subr.mxu0 0.0
        %629 = vmatpush2.msra.mxu0 0.0
        %630 = vmatprep.subr.mxu0 0.0
        %631 = vmatpush2.msra.mxu0 0.0
        %632 = vmatprep.subr.mxu0 0.0
        %633 = vmatpush2.msra.mxu0 0.0
        %634 = vmatprep.subr.mxu0 0.0
        %635 = vmatpush2.msra.mxu0 0.0
        %636 = vmatprep.subr.mxu0 0.0
        %637 = vmatpush2.msra.mxu0 0.0
        %638 = vmatprep.mubr.f32.mxu0 0.0
        %v639 = vand.u32 %v318, 4294901760
        %v640 = vsub.f32 %v318, %v639
        %v641 = vand.u32 %v640, 4294901760
        %642 = vmatmul.mubr.f32.gmra.mxu0 %v641
        %v643 = vpop.f32.mrf.mxu0
        %v644 = vadd.f32 %v567, %v643
        %v645 = vpop.f32.mrf.mxu0
        %646 = vdwg.mxu0
        %647 = vmatprep.subr.mxu0 0.0
        %648 = vmatpush1.msra.mxu0 0.0
        %649 = vmatprep.subr.mxu0 0.0
        %650 = vmatpush1.msra.mxu0 0.0
        %651 = vmatprep.subr.mxu0 0.0
        %652 = vmatpush1.msra.mxu0 0.0
        %653 = vmatprep.subr.mxu0 0.0
        %654 = vmatpush1.msra.mxu0 0.0
        %655 = vmatprep.subr.mxu0 0.0
        %656 = vmatpush1.msra.mxu0 0.0
        %657 = vmatprep.subr.mxu0 0.0
        %658 = vmatpush1.msra.mxu0 0.0
        %659 = vmatprep.subr.mxu0 0.0
        %660 = vmatpush1.msra.mxu0 0.0
        %661 = vmatprep.subr.mxu0 0.0
        %662 = vmatpush1.msra.mxu0 0.0
        %663 = vmatprep.subr.mxu0 0.0
        %664 = vmatpush1.msra.mxu0 0.0
        %665 = vmatprep.subr.mxu0 0.0
        %666 = vmatpush1.msra.mxu0 0.0
        %667 = vmatprep.subr.mxu0 0.0
        %668 = vmatpush1.msra.mxu0 0.0
        %669 = vmatprep.subr.mxu0 0.0
        %670 = vmatpush1.msra.mxu0 0.0
        %671 = vmatprep.subr.mxu0 0.0
        %v672 = vand.u32 %v314, 4294901760
        %v673 = vsub.f32 %v314, %v672
        %v674 = vand.u32 %v673, 4294901760
        %675 = vmatpush1.msra.mxu0 %v674
        %676 = vmatprep.subr.mxu0 0.0
        %v677 = vand.u32 %v313, 4294901760
        %v678 = vsub.f32 %v313, %v677
        %v679 = vand.u32 %v678, 4294901760
        %680 = vmatpush1.msra.mxu0 %v679
        %681 = vmatprep.subr.mxu0 0.0
        %v682 = vand.u32 %v312, 4294901760
        %v683 = vsub.f32 %v312, %v682
        %v684 = vand.u32 %v683, 4294901760
        %685 = vmatpush1.msra.mxu0 %v684
        %686 = vmatprep.subr.mxu0 0.0
        %v687 = vand.u32 %v311, 4294901760
        %v688 = vsub.f32 %v311, %v687
        %v689 = vand.u32 %v688, 4294901760
        %690 = vmatpush1.msra.mxu0 %v689
        %691 = vmatprep.subr.mxu0 0.0
        %692 = vmatpush2.msra.mxu0 0.0
        %693 = vmatprep.subr.mxu0 0.0
        %694 = vmatpush2.msra.mxu0 0.0
        %695 = vmatprep.subr.mxu0 0.0
        %696 = vmatpush2.msra.mxu0 0.0
        %697 = vmatprep.subr.mxu0 0.0
        %698 = vmatpush2.msra.mxu0 0.0
        %699 = vmatprep.subr.mxu0 0.0
        %700 = vmatpush2.msra.mxu0 0.0
        %701 = vmatprep.subr.mxu0 0.0
        %702 = vmatpush2.msra.mxu0 0.0
        %703 = vmatprep.subr.mxu0 0.0
        %704 = vmatpush2.msra.mxu0 0.0
        %705 = vmatprep.subr.mxu0 0.0
        %706 = vmatpush2.msra.mxu0 0.0
        %707 = vmatprep.subr.mxu0 0.0
        %708 = vmatpush2.msra.mxu0 0.0
        %709 = vmatprep.subr.mxu0 0.0
        %710 = vmatpush2.msra.mxu0 0.0
        %711 = vmatprep.subr.mxu0 0.0
        %712 = vmatpush2.msra.mxu0 0.0
        %713 = vmatprep.subr.mxu0 0.0
        %714 = vmatpush2.msra.mxu0 0.0
        %715 = vmatprep.subr.mxu0 0.0
        %716 = vmatpush2.msra.mxu0 0.0
        %717 = vmatprep.subr.mxu0 0.0
        %718 = vmatpush2.msra.mxu0 0.0
        %719 = vmatprep.subr.mxu0 0.0
        %720 = vmatpush2.msra.mxu0 0.0
        %721 = vmatprep.subr.mxu0 0.0
        %722 = vmatpush2.msra.mxu0 0.0
        %723 = vmatprep.mubr.f32.mxu0 0.0
        %v724 = vand.u32 %v318, 4294901760
        %725 = vmatmul.mubr.f32.gmra.mxu0 %v724
        %v726 = vpop.f32.mrf.mxu0
        %v727 = vadd.f32 %v644, %v726
        %v728 = vpop.f32.mrf.mxu0
        %729 = vdwg.mxu0
        %730 = vmatprep.subr.mxu0 0.0
        %731 = vmatpush1.msra.mxu0 0.0
        %732 = vmatprep.subr.mxu0 0.0
        %733 = vmatpush1.msra.mxu0 0.0
        %734 = vmatprep.subr.mxu0 0.0
        %735 = vmatpush1.msra.mxu0 0.0
        %736 = vmatprep.subr.mxu0 0.0
        %737 = vmatpush1.msra.mxu0 0.0
        %738 = vmatprep.subr.mxu0 0.0
        %739 = vmatpush1.msra.mxu0 0.0
        %740 = vmatprep.subr.mxu0 0.0
        %741 = vmatpush1.msra.mxu0 0.0
        %742 = vmatprep.subr.mxu0 0.0
        %743 = vmatpush1.msra.mxu0 0.0
        %744 = vmatprep.subr.mxu0 0.0
        %745 = vmatpush1.msra.mxu0 0.0
        %746 = vmatprep.subr.mxu0 0.0
        %747 = vmatpush1.msra.mxu0 0.0
        %748 = vmatprep.subr.mxu0 0.0
        %749 = vmatpush1.msra.mxu0 0.0
        %750 = vmatprep.subr.mxu0 0.0
        %751 = vmatpush1.msra.mxu0 0.0
        %752 = vmatprep.subr.mxu0 0.0
        %753 = vmatpush1.msra.mxu0 0.0
        %754 = vmatprep.subr.mxu0 0.0
        %v755 = vand.u32 %v314, 4294901760
        %756 = vmatpush1.msra.mxu0 %v755
        %757 = vmatprep.subr.mxu0 0.0
        %v758 = vand.u32 %v313, 4294901760
        %759 = vmatpush1.msra.mxu0 %v758
        %760 = vmatprep.subr.mxu0 0.0
        %v761 = vand.u32 %v312, 4294901760
        %762 = vmatpush1.msra.mxu0 %v761
        %763 = vmatprep.subr.mxu0 0.0
        %v764 = vand.u32 %v311, 4294901760
        %765 = vmatpush1.msra.mxu0 %v764
        %766 = vmatprep.subr.mxu0 0.0
        %767 = vmatpush2.msra.mxu0 0.0
        %768 = vmatprep.subr.mxu0 0.0
        %769 = vmatpush2.msra.mxu0 0.0
        %770 = vmatprep.subr.mxu0 0.0
        %771 = vmatpush2.msra.mxu0 0.0
        %772 = vmatprep.subr.mxu0 0.0
        %773 = vmatpush2.msra.mxu0 0.0
        %774 = vmatprep.subr.mxu0 0.0
        %775 = vmatpush2.msra.mxu0 0.0
        %776 = vmatprep.subr.mxu0 0.0
        %777 = vmatpush2.msra.mxu0 0.0
        %778 = vmatprep.subr.mxu0 0.0
        %779 = vmatpush2.msra.mxu0 0.0
        %780 = vmatprep.subr.mxu0 0.0
        %781 = vmatpush2.msra.mxu0 0.0
        %782 = vmatprep.subr.mxu0 0.0
        %783 = vmatpush2.msra.mxu0 0.0
        %784 = vmatprep.subr.mxu0 0.0
        %785 = vmatpush2.msra.mxu0 0.0
        %786 = vmatprep.subr.mxu0 0.0
        %787 = vmatpush2.msra.mxu0 0.0
        %788 = vmatprep.subr.mxu0 0.0
        %789 = vmatpush2.msra.mxu0 0.0
        %790 = vmatprep.subr.mxu0 0.0
        %791 = vmatpush2.msra.mxu0 0.0
        %792 = vmatprep.subr.mxu0 0.0
        %793 = vmatpush2.msra.mxu0 0.0
        %794 = vmatprep.subr.mxu0 0.0
        %795 = vmatpush2.msra.mxu0 0.0
        %796 = vmatprep.subr.mxu0 0.0
        %797 = vmatpush2.msra.mxu0 0.0
        %798 = vmatprep.mubr.f32.mxu0 0.0
        %v799 = vand.u32 %v318, 4294901760
        %800 = vmatmul.mubr.f32.gmra.mxu0 %v799
        %v801 = vpop.f32.mrf.mxu0
        %v802 = vadd.f32 %v727, %v801
        %v803 = vpop.f32.mrf.mxu0
        %804 = vdwg.mxu0
        %v805 = vmul.f32 %v802, 0.17677669
        %v806 = vld [vmem:[%s310] sm:$0xff]
        %v808 = vsel %vm316, %v806, 0
        %810 = vmatprep.subr.mxu0 0.0
        %811 = vmatpush1.msra.mxu0 0.0
        %812 = vmatprep.subr.mxu0 0.0
        %813 = vmatpush1.msra.mxu0 0.0
        %814 = vmatprep.subr.mxu0 0.0
        %815 = vmatpush1.msra.mxu0 0.0
        %816 = vmatprep.subr.mxu0 0.0
        %817 = vmatpush1.msra.mxu0 0.0
        %818 = vmatprep.subr.mxu0 0.0
        %819 = vmatpush1.msra.mxu0 0.0
        %820 = vmatprep.subr.mxu0 0.0
        %821 = vmatpush1.msra.mxu0 0.0
        %822 = vmatprep.subr.mxu0 0.0
        %823 = vmatpush1.msra.mxu0 0.0
        %824 = vmatprep.subr.mxu0 0.0
        %825 = vmatpush1.msra.mxu0 0.0
        %826 = vmatprep.subr.mxu0 0.0
        %827 = vmatpush1.msra.mxu0 0.0
        %828 = vmatprep.subr.mxu0 0.0
        %829 = vmatpush1.msra.mxu0 0.0
        %830 = vmatprep.subr.mxu0 0.0
        %831 = vmatpush1.msra.mxu0 0.0
        %832 = vmatprep.subr.mxu0 0.0
        %833 = vmatpush1.msra.mxu0 0.0
        %834 = vmatprep.subr.mxu0 0.0
        %v835 = vand.u32 %v314, 4294901760
        %836 = vmatpush1.msra.mxu0 %v835
        %837 = vmatprep.subr.mxu0 0.0
        %v838 = vand.u32 %v313, 4294901760
        %839 = vmatpush1.msra.mxu0 %v838
        %840 = vmatprep.subr.mxu0 0.0
        %v841 = vand.u32 %v312, 4294901760
        %842 = vmatpush1.msra.mxu0 %v841
        %843 = vmatprep.subr.mxu0 0.0
        %v844 = vand.u32 %v311, 4294901760
        %845 = vmatpush1.msra.mxu0 %v844
        %846 = vmatprep.subr.mxu0 0.0
        %847 = vmatpush2.msra.mxu0 0.0
        %848 = vmatprep.subr.mxu0 0.0
        %849 = vmatpush2.msra.mxu0 0.0
        %850 = vmatprep.subr.mxu0 0.0
        %851 = vmatpush2.msra.mxu0 0.0
        %852 = vmatprep.subr.mxu0 0.0
        %853 = vmatpush2.msra.mxu0 0.0
        %854 = vmatprep.subr.mxu0 0.0
        %855 = vmatpush2.msra.mxu0 0.0
        %856 = vmatprep.subr.mxu0 0.0
        %857 = vmatpush2.msra.mxu0 0.0
        %858 = vmatprep.subr.mxu0 0.0
        %859 = vmatpush2.msra.mxu0 0.0
        %860 = vmatprep.subr.mxu0 0.0
        %861 = vmatpush2.msra.mxu0 0.0
        %862 = vmatprep.subr.mxu0 0.0
        %863 = vmatpush2.msra.mxu0 0.0
        %864 = vmatprep.subr.mxu0 0.0
        %865 = vmatpush2.msra.mxu0 0.0
        %866 = vmatprep.subr.mxu0 0.0
        %867 = vmatpush2.msra.mxu0 0.0
        %868 = vmatprep.subr.mxu0 0.0
        %869 = vmatpush2.msra.mxu0 0.0
        %870 = vmatprep.subr.mxu0 0.0
        %871 = vmatpush2.msra.mxu0 0.0
        %872 = vmatprep.subr.mxu0 0.0
        %873 = vmatpush2.msra.mxu0 0.0
        %874 = vmatprep.subr.mxu0 0.0
        %875 = vmatpush2.msra.mxu0 0.0
        %876 = vmatprep.subr.mxu0 0.0
        %877 = vmatpush2.msra.mxu0 0.0
        %878 = vmatprep.mubr.f32.mxu0 0.0
        %v879 = vand.u32 %v808, 4294901760
        %v880 = vsub.f32 %v808, %v879
        %v881 = vand.u32 %v880, 4294901760
        %v882 = vsub.f32 %v880, %v881
        %v883 = vand.u32 %v882, 4294901760
        %884 = vmatmul.mubr.f32.gmra.mxu0 %v883
        %v885 = vpop.f32.mrf.mxu0
        %v886 = vadd.f32 0.0, %v885
        %v887 = vpop.f32.mrf.mxu0
        %888 = vdwg.mxu0
        %889 = vmatprep.subr.mxu0 0.0
        %890 = vmatpush1.msra.mxu0 0.0
        %891 = vmatprep.subr.mxu0 0.0
        %892 = vmatpush1.msra.mxu0 0.0
        %893 = vmatprep.subr.mxu0 0.0
        %894 = vmatpush1.msra.mxu0 0.0
        %895 = vmatprep.subr.mxu0 0.0
        %896 = vmatpush1.msra.mxu0 0.0
        %897 = vmatprep.subr.mxu0 0.0
        %898 = vmatpush1.msra.mxu0 0.0
        %899 = vmatprep.subr.mxu0 0.0
        %900 = vmatpush1.msra.mxu0 0.0
        %901 = vmatprep.subr.mxu0 0.0
        %902 = vmatpush1.msra.mxu0 0.0
        %903 = vmatprep.subr.mxu0 0.0
        %904 = vmatpush1.msra.mxu0 0.0
        %905 = vmatprep.subr.mxu0 0.0
        %906 = vmatpush1.msra.mxu0 0.0
        %907 = vmatprep.subr.mxu0 0.0
        %908 = vmatpush1.msra.mxu0 0.0
        %909 = vmatprep.subr.mxu0 0.0
        %910 = vmatpush1.msra.mxu0 0.0
        %911 = vmatprep.subr.mxu0 0.0
        %912 = vmatpush1.msra.mxu0 0.0
        %913 = vmatprep.subr.mxu0 0.0
        %v914 = vand.u32 %v314, 4294901760
        %v915 = vsub.f32 %v314, %v914
        %v916 = vand.u32 %v915, 4294901760
        %v917 = vsub.f32 %v915, %v916
        %v918 = vand.u32 %v917, 4294901760
        %919 = vmatpush1.msra.mxu0 %v918
        %920 = vmatprep.subr.mxu0 0.0
        %v921 = vand.u32 %v313, 4294901760
        %v922 = vsub.f32 %v313, %v921
        %v923 = vand.u32 %v922, 4294901760
        %v924 = vsub.f32 %v922, %v923
        %v925 = vand.u32 %v924, 4294901760
        %926 = vmatpush1.msra.mxu0 %v925
        %927 = vmatprep.subr.mxu0 0.0
        %v928 = vand.u32 %v312, 4294901760
        %v929 = vsub.f32 %v312, %v928
        %v930 = vand.u32 %v929, 4294901760
        %v931 = vsub.f32 %v929, %v930
        %v932 = vand.u32 %v931, 4294901760
        %933 = vmatpush1.msra.mxu0 %v932
        %934 = vmatprep.subr.mxu0 0.0
        %v935 = vand.u32 %v311, 4294901760
        %v936 = vsub.f32 %v311, %v935
        %v937 = vand.u32 %v936, 4294901760
        %v938 = vsub.f32 %v936, %v937
        %v939 = vand.u32 %v938, 4294901760
        %940 = vmatpush1.msra.mxu0 %v939
        %941 = vmatprep.subr.mxu0 0.0
        %942 = vmatpush2.msra.mxu0 0.0
        %943 = vmatprep.subr.mxu0 0.0
        %944 = vmatpush2.msra.mxu0 0.0
        %945 = vmatprep.subr.mxu0 0.0
        %946 = vmatpush2.msra.mxu0 0.0
        %947 = vmatprep.subr.mxu0 0.0
        %948 = vmatpush2.msra.mxu0 0.0
        %949 = vmatprep.subr.mxu0 0.0
        %950 = vmatpush2.msra.mxu0 0.0
        %951 = vmatprep.subr.mxu0 0.0
        %952 = vmatpush2.msra.mxu0 0.0
        %953 = vmatprep.subr.mxu0 0.0
        %954 = vmatpush2.msra.mxu0 0.0
        %955 = vmatprep.subr.mxu0 0.0
        %956 = vmatpush2.msra.mxu0 0.0
        %957 = vmatprep.subr.mxu0 0.0
        %958 = vmatpush2.msra.mxu0 0.0
        %959 = vmatprep.subr.mxu0 0.0
        %960 = vmatpush2.msra.mxu0 0.0
        %961 = vmatprep.subr.mxu0 0.0
        %962 = vmatpush2.msra.mxu0 0.0
        %963 = vmatprep.subr.mxu0 0.0
        %964 = vmatpush2.msra.mxu0 0.0
        %965 = vmatprep.subr.mxu0 0.0
        %966 = vmatpush2.msra.mxu0 0.0
        %967 = vmatprep.subr.mxu0 0.0
        %968 = vmatpush2.msra.mxu0 0.0
        %969 = vmatprep.subr.mxu0 0.0
        %970 = vmatpush2.msra.mxu0 0.0
        %971 = vmatprep.subr.mxu0 0.0
        %972 = vmatpush2.msra.mxu0 0.0
        %973 = vmatprep.mubr.f32.mxu0 0.0
        %v974 = vand.u32 %v808, 4294901760
        %975 = vmatmul.mubr.f32.gmra.mxu0 %v974
        %v976 = vpop.f32.mrf.mxu0
        %v977 = vadd.f32 %v886, %v976
        %v978 = vpop.f32.mrf.mxu0
        %979 = vdwg.mxu0
        %980 = vmatprep.subr.mxu0 0.0
        %981 = vmatpush1.msra.mxu0 0.0
        %982 = vmatprep.subr.mxu0 0.0
        %983 = vmatpush1.msra.mxu0 0.0
        %984 = vmatprep.subr.mxu0 0.0
        %985 = vmatpush1.msra.mxu0 0.0
        %986 = vmatprep.subr.mxu0 0.0
        %987 = vmatpush1.msra.mxu0 0.0
        %988 = vmatprep.subr.mxu0 0.0
        %989 = vmatpush1.msra.mxu0 0.0
        %990 = vmatprep.subr.mxu0 0.0
        %991 = vmatpush1.msra.mxu0 0.0
        %992 = vmatprep.subr.mxu0 0.0
        %993 = vmatpush1.msra.mxu0 0.0
        %994 = vmatprep.subr.mxu0 0.0
        %995 = vmatpush1.msra.mxu0 0.0
        %996 = vmatprep.subr.mxu0 0.0
        %997 = vmatpush1.msra.mxu0 0.0
        %998 = vmatprep.subr.mxu0 0.0
        %999 = vmatpush1.msra.mxu0 0.0
        %1000 = vmatprep.subr.mxu0 0.0
        %1001 = vmatpush1.msra.mxu0 0.0
        %1002 = vmatprep.subr.mxu0 0.0
        %1003 = vmatpush1.msra.mxu0 0.0
        %1004 = vmatprep.subr.mxu0 0.0
        %v1005 = vand.u32 %v314, 4294901760
        %v1006 = vsub.f32 %v314, %v1005
        %1007 = vmatpush1.msra.mxu0 %v1006
        %1008 = vmatprep.subr.mxu0 0.0
        %v1009 = vand.u32 %v313, 4294901760
        %v1010 = vsub.f32 %v313, %v1009
        %1011 = vmatpush1.msra.mxu0 %v1010
        %1012 = vmatprep.subr.mxu0 0.0
        %v1013 = vand.u32 %v312, 4294901760
        %v1014 = vsub.f32 %v312, %v1013
        %1015 = vmatpush1.msra.mxu0 %v1014
        %1016 = vmatprep.subr.mxu0 0.0
        %v1017 = vand.u32 %v311, 4294901760
        %v1018 = vsub.f32 %v311, %v1017
        %1019 = vmatpush1.msra.mxu0 %v1018
        %1020 = vmatprep.subr.mxu0 0.0
        %1021 = vmatpush2.msra.mxu0 0.0
        %1022 = vmatprep.subr.mxu0 0.0
        %1023 = vmatpush2.msra.mxu0 0.0
        %1024 = vmatprep.subr.mxu0 0.0
        %1025 = vmatpush2.msra.mxu0 0.0
        %1026 = vmatprep.subr.mxu0 0.0
        %1027 = vmatpush2.msra.mxu0 0.0
        %1028 = vmatprep.subr.mxu0 0.0
        %1029 = vmatpush2.msra.mxu0 0.0
        %1030 = vmatprep.subr.mxu0 0.0
        %1031 = vmatpush2.msra.mxu0 0.0
        %1032 = vmatprep.subr.mxu0 0.0
        %1033 = vmatpush2.msra.mxu0 0.0
        %1034 = vmatprep.subr.mxu0 0.0
        %1035 = vmatpush2.msra.mxu0 0.0
        %1036 = vmatprep.subr.mxu0 0.0
        %1037 = vmatpush2.msra.mxu0 0.0
        %1038 = vmatprep.subr.mxu0 0.0
        %1039 = vmatpush2.msra.mxu0 0.0
        %1040 = vmatprep.subr.mxu0 0.0
        %1041 = vmatpush2.msra.mxu0 0.0
        %1042 = vmatprep.subr.mxu0 0.0
        %1043 = vmatpush2.msra.mxu0 0.0
        %1044 = vmatprep.subr.mxu0 0.0
        %1045 = vmatpush2.msra.mxu0 0.0
        %1046 = vmatprep.subr.mxu0 0.0
        %1047 = vmatpush2.msra.mxu0 0.0
        %1048 = vmatprep.subr.mxu0 0.0
        %1049 = vmatpush2.msra.mxu0 0.0
        %1050 = vmatprep.subr.mxu0 0.0
        %1051 = vmatpush2.msra.mxu0 0.0
        %1052 = vmatprep.mubr.f32.mxu0 0.0
        %v1053 = vand.u32 %v808, 4294901760
        %v1054 = vsub.f32 %v808, %v1053
        %1055 = vmatmul.mubr.f32.gmra.mxu0 %v1054
        %v1056 = vpop.f32.mrf.mxu0
        %v1057 = vadd.f32 %v977, %v1056
        %v1058 = vpop.f32.mrf.mxu0
        %1059 = vdwg.mxu0
        %1060 = vmatprep.subr.mxu0 0.0
        %1061 = vmatpush1.msra.mxu0 0.0
        %1062 = vmatprep.subr.mxu0 0.0
        %1063 = vmatpush1.msra.mxu0 0.0
        %1064 = vmatprep.subr.mxu0 0.0
        %1065 = vmatpush1.msra.mxu0 0.0
        %1066 = vmatprep.subr.mxu0 0.0
        %1067 = vmatpush1.msra.mxu0 0.0
        %1068 = vmatprep.subr.mxu0 0.0
        %1069 = vmatpush1.msra.mxu0 0.0
        %1070 = vmatprep.subr.mxu0 0.0
        %1071 = vmatpush1.msra.mxu0 0.0
        %1072 = vmatprep.subr.mxu0 0.0
        %1073 = vmatpush1.msra.mxu0 0.0
        %1074 = vmatprep.subr.mxu0 0.0
        %1075 = vmatpush1.msra.mxu0 0.0
        %1076 = vmatprep.subr.mxu0 0.0
        %1077 = vmatpush1.msra.mxu0 0.0
        %1078 = vmatprep.subr.mxu0 0.0
        %1079 = vmatpush1.msra.mxu0 0.0
        %1080 = vmatprep.subr.mxu0 0.0
        %1081 = vmatpush1.msra.mxu0 0.0
        %1082 = vmatprep.subr.mxu0 0.0
        %1083 = vmatpush1.msra.mxu0 0.0
        %1084 = vmatprep.subr.mxu0 0.0
        %v1085 = vand.u32 %v314, 4294901760
        %1086 = vmatpush1.msra.mxu0 %v1085
        %1087 = vmatprep.subr.mxu0 0.0
        %v1088 = vand.u32 %v313, 4294901760
        %1089 = vmatpush1.msra.mxu0 %v1088
        %1090 = vmatprep.subr.mxu0 0.0
        %v1091 = vand.u32 %v312, 4294901760
        %1092 = vmatpush1.msra.mxu0 %v1091
        %1093 = vmatprep.subr.mxu0 0.0
        %v1094 = vand.u32 %v311, 4294901760
        %1095 = vmatpush1.msra.mxu0 %v1094
        %1096 = vmatprep.subr.mxu0 0.0
        %1097 = vmatpush2.msra.mxu0 0.0
        %1098 = vmatprep.subr.mxu0 0.0
        %1099 = vmatpush2.msra.mxu0 0.0
        %1100 = vmatprep.subr.mxu0 0.0
        %1101 = vmatpush2.msra.mxu0 0.0
        %1102 = vmatprep.subr.mxu0 0.0
        %1103 = vmatpush2.msra.mxu0 0.0
        %1104 = vmatprep.subr.mxu0 0.0
        %1105 = vmatpush2.msra.mxu0 0.0
        %1106 = vmatprep.subr.mxu0 0.0
        %1107 = vmatpush2.msra.mxu0 0.0
        %1108 = vmatprep.subr.mxu0 0.0
        %1109 = vmatpush2.msra.mxu0 0.0
        %1110 = vmatprep.subr.mxu0 0.0
        %1111 = vmatpush2.msra.mxu0 0.0
        %1112 = vmatprep.subr.mxu0 0.0
        %1113 = vmatpush2.msra.mxu0 0.0
        %1114 = vmatprep.subr.mxu0 0.0
        %1115 = vmatpush2.msra.mxu0 0.0
        %1116 = vmatprep.subr.mxu0 0.0
        %1117 = vmatpush2.msra.mxu0 0.0
        %1118 = vmatprep.subr.mxu0 0.0
        %1119 = vmatpush2.msra.mxu0 0.0
        %1120 = vmatprep.subr.mxu0 0.0
        %1121 = vmatpush2.msra.mxu0 0.0
        %1122 = vmatprep.subr.mxu0 0.0
        %1123 = vmatpush2.msra.mxu0 0.0
        %1124 = vmatprep.subr.mxu0 0.0
        %1125 = vmatpush2.msra.mxu0 0.0
        %1126 = vmatprep.subr.mxu0 0.0
        %1127 = vmatpush2.msra.mxu0 0.0
        %1128 = vmatprep.mubr.f32.mxu0 0.0
        %v1129 = vand.u32 %v808, 4294901760
        %v1130 = vsub.f32 %v808, %v1129
        %v1131 = vand.u32 %v1130, 4294901760
        %1132 = vmatmul.mubr.f32.gmra.mxu0 %v1131
        %v1133 = vpop.f32.mrf.mxu0
        %v1134 = vadd.f32 %v1057, %v1133
        %v1135 = vpop.f32.mrf.mxu0
        %1136 = vdwg.mxu0
        %1137 = vmatprep.subr.mxu0 0.0
        %1138 = vmatpush1.msra.mxu0 0.0
        %1139 = vmatprep.subr.mxu0 0.0
        %1140 = vmatpush1.msra.mxu0 0.0
        %1141 = vmatprep.subr.mxu0 0.0
        %1142 = vmatpush1.msra.mxu0 0.0
        %1143 = vmatprep.subr.mxu0 0.0
        %1144 = vmatpush1.msra.mxu0 0.0
        %1145 = vmatprep.subr.mxu0 0.0
        %1146 = vmatpush1.msra.mxu0 0.0
        %1147 = vmatprep.subr.mxu0 0.0
        %1148 = vmatpush1.msra.mxu0 0.0
        %1149 = vmatprep.subr.mxu0 0.0
        %1150 = vmatpush1.msra.mxu0 0.0
        %1151 = vmatprep.subr.mxu0 0.0
        %1152 = vmatpush1.msra.mxu0 0.0
        %1153 = vmatprep.subr.mxu0 0.0
        %1154 = vmatpush1.msra.mxu0 0.0
        %1155 = vmatprep.subr.mxu0 0.0
        %1156 = vmatpush1.msra.mxu0 0.0
        %1157 = vmatprep.subr.mxu0 0.0
        %1158 = vmatpush1.msra.mxu0 0.0
        %1159 = vmatprep.subr.mxu0 0.0
        %1160 = vmatpush1.msra.mxu0 0.0
        %1161 = vmatprep.subr.mxu0 0.0
        %v1162 = vand.u32 %v314, 4294901760
        %v1163 = vsub.f32 %v314, %v1162
        %v1164 = vand.u32 %v1163, 4294901760
        %1165 = vmatpush1.msra.mxu0 %v1164
        %1166 = vmatprep.subr.mxu0 0.0
        %v1167 = vand.u32 %v313, 4294901760
        %v1168 = vsub.f32 %v313, %v1167
        %v1169 = vand.u32 %v1168, 4294901760
        %1170 = vmatpush1.msra.mxu0 %v1169
        %1171 = vmatprep.subr.mxu0 0.0
        %v1172 = vand.u32 %v312, 4294901760
        %v1173 = vsub.f32 %v312, %v1172
        %v1174 = vand.u32 %v1173, 4294901760
        %1175 = vmatpush1.msra.mxu0 %v1174
        %1176 = vmatprep.subr.mxu0 0.0
        %v1177 = vand.u32 %v311, 4294901760
        %v1178 = vsub.f32 %v311, %v1177
        %v1179 = vand.u32 %v1178, 4294901760
        %1180 = vmatpush1.msra.mxu0 %v1179
        %1181 = vmatprep.subr.mxu0 0.0
        %1182 = vmatpush2.msra.mxu0 0.0
        %1183 = vmatprep.subr.mxu0 0.0
        %1184 = vmatpush2.msra.mxu0 0.0
        %1185 = vmatprep.subr.mxu0 0.0
        %1186 = vmatpush2.msra.mxu0 0.0
        %1187 = vmatprep.subr.mxu0 0.0
        %1188 = vmatpush2.msra.mxu0 0.0
        %1189 = vmatprep.subr.mxu0 0.0
        %1190 = vmatpush2.msra.mxu0 0.0
        %1191 = vmatprep.subr.mxu0 0.0
        %1192 = vmatpush2.msra.mxu0 0.0
        %1193 = vmatprep.subr.mxu0 0.0
        %1194 = vmatpush2.msra.mxu0 0.0
        %1195 = vmatprep.subr.mxu0 0.0
        %1196 = vmatpush2.msra.mxu0 0.0
        %1197 = vmatprep.subr.mxu0 0.0
        %1198 = vmatpush2.msra.mxu0 0.0
        %1199 = vmatprep.subr.mxu0 0.0
        %1200 = vmatpush2.msra.mxu0 0.0
        %1201 = vmatprep.subr.mxu0 0.0
        %1202 = vmatpush2.msra.mxu0 0.0
        %1203 = vmatprep.subr.mxu0 0.0
        %1204 = vmatpush2.msra.mxu0 0.0
        %1205 = vmatprep.subr.mxu0 0.0
        %1206 = vmatpush2.msra.mxu0 0.0
        %1207 = vmatprep.subr.mxu0 0.0
        %1208 = vmatpush2.msra.mxu0 0.0
        %1209 = vmatprep.subr.mxu0 0.0
        %1210 = vmatpush2.msra.mxu0 0.0
        %1211 = vmatprep.subr.mxu0 0.0
        %1212 = vmatpush2.msra.mxu0 0.0
        %1213 = vmatprep.mubr.f32.mxu0 0.0
        %v1214 = vand.u32 %v808, 4294901760
        %1215 = vmatmul.mubr.f32.gmra.mxu0 %v1214
        %v1216 = vpop.f32.mrf.mxu0
        %v1217 = vadd.f32 %v1134, %v1216
        %v1218 = vpop.f32.mrf.mxu0
        %1219 = vdwg.mxu0
        %1220 = vmatprep.subr.mxu0 0.0
        %1221 = vmatpush1.msra.mxu0 0.0
        %1222 = vmatprep.subr.mxu0 0.0
        %1223 = vmatpush1.msra.mxu0 0.0
        %1224 = vmatprep.subr.mxu0 0.0
        %1225 = vmatpush1.msra.mxu0 0.0
        %1226 = vmatprep.subr.mxu0 0.0
        %1227 = vmatpush1.msra.mxu0 0.0
        %1228 = vmatprep.subr.mxu0 0.0
        %1229 = vmatpush1.msra.mxu0 0.0
        %1230 = vmatprep.subr.mxu0 0.0
        %1231 = vmatpush1.msra.mxu0 0.0
        %1232 = vmatprep.subr.mxu0 0.0
        %1233 = vmatpush1.msra.mxu0 0.0
        %1234 = vmatprep.subr.mxu0 0.0
        %1235 = vmatpush1.msra.mxu0 0.0
        %1236 = vmatprep.subr.mxu0 0.0
        %1237 = vmatpush1.msra.mxu0 0.0
        %1238 = vmatprep.subr.mxu0 0.0
        %1239 = vmatpush1.msra.mxu0 0.0
        %1240 = vmatprep.subr.mxu0 0.0
        %1241 = vmatpush1.msra.mxu0 0.0
        %1242 = vmatprep.subr.mxu0 0.0
        %1243 = vmatpush1.msra.mxu0 0.0
        %1244 = vmatprep.subr.mxu0 0.0
        %v1245 = vand.u32 %v314, 4294901760
        %1246 = vmatpush1.msra.mxu0 %v1245
        %1247 = vmatprep.subr.mxu0 0.0
        %v1248 = vand.u32 %v313, 4294901760
        %1249 = vmatpush1.msra.mxu0 %v1248
        %1250 = vmatprep.subr.mxu0 0.0
        %v1251 = vand.u32 %v312, 4294901760
        %1252 = vmatpush1.msra.mxu0 %v1251
        %1253 = vmatprep.subr.mxu0 0.0
        %v1254 = vand.u32 %v311, 4294901760
        %1255 = vmatpush1.msra.mxu0 %v1254
        %1256 = vmatprep.subr.mxu0 0.0
        %1257 = vmatpush2.msra.mxu0 0.0
        %1258 = vmatprep.subr.mxu0 0.0
        %1259 = vmatpush2.msra.mxu0 0.0
        %1260 = vmatprep.subr.mxu0 0.0
        %1261 = vmatpush2.msra.mxu0 0.0
        %1262 = vmatprep.subr.mxu0 0.0
        %1263 = vmatpush2.msra.mxu0 0.0
        %1264 = vmatprep.subr.mxu0 0.0
        %1265 = vmatpush2.msra.mxu0 0.0
        %1266 = vmatprep.subr.mxu0 0.0
        %1267 = vmatpush2.msra.mxu0 0.0
        %1268 = vmatprep.subr.mxu0 0.0
        %1269 = vmatpush2.msra.mxu0 0.0
        %1270 = vmatprep.subr.mxu0 0.0
        %1271 = vmatpush2.msra.mxu0 0.0
        %1272 = vmatprep.subr.mxu0 0.0
        %1273 = vmatpush2.msra.mxu0 0.0
        %1274 = vmatprep.subr.mxu0 0.0
        %1275 = vmatpush2.msra.mxu0 0.0
        %1276 = vmatprep.subr.mxu0 0.0
        %1277 = vmatpush2.msra.mxu0 0.0
        %1278 = vmatprep.subr.mxu0 0.0
        %1279 = vmatpush2.msra.mxu0 0.0
        %1280 = vmatprep.subr.mxu0 0.0
        %1281 = vmatpush2.msra.mxu0 0.0
        %1282 = vmatprep.subr.mxu0 0.0
        %1283 = vmatpush2.msra.mxu0 0.0
        %1284 = vmatprep.subr.mxu0 0.0
        %1285 = vmatpush2.msra.mxu0 0.0
        %1286 = vmatprep.subr.mxu0 0.0
        %1287 = vmatpush2.msra.mxu0 0.0
        %1288 = vmatprep.mubr.f32.mxu0 0.0
        %v1289 = vand.u32 %v808, 4294901760
        %1290 = vmatmul.mubr.f32.gmra.mxu0 %v1289
        %v1291 = vpop.f32.mrf.mxu0
        %v1292 = vadd.f32 %v1217, %v1291
        %v1293 = vpop.f32.mrf.mxu0
        %1294 = vdwg.mxu0
        %v1295 = vmul.f32 %v1292, 0.17677669
        %v1296 = vld [vmem:[%s254] sm:$0xff]
        %v1298 = vsel %vm316, %v1296, 0
        %1300 = vmatprep.subr.mxu0 0.0
        %1301 = vmatpush1.msra.mxu0 0.0
        %1302 = vmatprep.subr.mxu0 0.0
        %1303 = vmatpush1.msra.mxu0 0.0
        %1304 = vmatprep.subr.mxu0 0.0
        %1305 = vmatpush1.msra.mxu0 0.0
        %1306 = vmatprep.subr.mxu0 0.0
        %1307 = vmatpush1.msra.mxu0 0.0
        %1308 = vmatprep.subr.mxu0 0.0
        %1309 = vmatpush1.msra.mxu0 0.0
        %1310 = vmatprep.subr.mxu0 0.0
        %1311 = vmatpush1.msra.mxu0 0.0
        %1312 = vmatprep.subr.mxu0 0.0
        %1313 = vmatpush1.msra.mxu0 0.0
        %1314 = vmatprep.subr.mxu0 0.0
        %1315 = vmatpush1.msra.mxu0 0.0
        %1316 = vmatprep.subr.mxu0 0.0
        %1317 = vmatpush1.msra.mxu0 0.0
        %1318 = vmatprep.subr.mxu0 0.0
        %1319 = vmatpush1.msra.mxu0 0.0
        %1320 = vmatprep.subr.mxu0 0.0
        %1321 = vmatpush1.msra.mxu0 0.0
        %1322 = vmatprep.subr.mxu0 0.0
        %1323 = vmatpush1.msra.mxu0 0.0
        %1324 = vmatprep.subr.mxu0 0.0
        %v1325 = vand.u32 %v314, 4294901760
        %1326 = vmatpush1.msra.mxu0 %v1325
        %1327 = vmatprep.subr.mxu0 0.0
        %v1328 = vand.u32 %v313, 4294901760
        %1329 = vmatpush1.msra.mxu0 %v1328
        %1330 = vmatprep.subr.mxu0 0.0
        %v1331 = vand.u32 %v312, 4294901760
        %1332 = vmatpush1.msra.mxu0 %v1331
        %1333 = vmatprep.subr.mxu0 0.0
        %v1334 = vand.u32 %v311, 4294901760
        %1335 = vmatpush1.msra.mxu0 %v1334
        %1336 = vmatprep.subr.mxu0 0.0
        %1337 = vmatpush2.msra.mxu0 0.0
        %1338 = vmatprep.subr.mxu0 0.0
        %1339 = vmatpush2.msra.mxu0 0.0
        %1340 = vmatprep.subr.mxu0 0.0
        %1341 = vmatpush2.msra.mxu0 0.0
        %1342 = vmatprep.subr.mxu0 0.0
        %1343 = vmatpush2.msra.mxu0 0.0
        %1344 = vmatprep.subr.mxu0 0.0
        %1345 = vmatpush2.msra.mxu0 0.0
        %1346 = vmatprep.subr.mxu0 0.0
        %1347 = vmatpush2.msra.mxu0 0.0
        %1348 = vmatprep.subr.mxu0 0.0
        %1349 = vmatpush2.msra.mxu0 0.0
        %1350 = vmatprep.subr.mxu0 0.0
        %1351 = vmatpush2.msra.mxu0 0.0
        %1352 = vmatprep.subr.mxu0 0.0
        %1353 = vmatpush2.msra.mxu0 0.0
        %1354 = vmatprep.subr.mxu0 0.0
        %1355 = vmatpush2.msra.mxu0 0.0
        %1356 = vmatprep.subr.mxu0 0.0
        %1357 = vmatpush2.msra.mxu0 0.0
        %1358 = vmatprep.subr.mxu0 0.0
        %1359 = vmatpush2.msra.mxu0 0.0
        %1360 = vmatprep.subr.mxu0 0.0
        %1361 = vmatpush2.msra.mxu0 0.0
        %1362 = vmatprep.subr.mxu0 0.0
        %1363 = vmatpush2.msra.mxu0 0.0
        %1364 = vmatprep.subr.mxu0 0.0
        %1365 = vmatpush2.msra.mxu0 0.0
        %1366 = vmatprep.subr.mxu0 0.0
        %1367 = vmatpush2.msra.mxu0 0.0
        %1368 = vmatprep.mubr.f32.mxu0 0.0
        %v1369 = vand.u32 %v1298, 4294901760
        %v1370 = vsub.f32 %v1298, %v1369
        %v1371 = vand.u32 %v1370, 4294901760
        %v1372 = vsub.f32 %v1370, %v1371
        %v1373 = vand.u32 %v1372, 4294901760
        %1374 = vmatmul.mubr.f32.gmra.mxu0 %v1373
        %v1375 = vpop.f32.mrf.mxu0
        %v1376 = vadd.f32 0.0, %v1375
        %v1377 = vpop.f32.mrf.mxu0
        %1378 = vdwg.mxu0
        %1379 = vmatprep.subr.mxu0 0.0
        %1380 = vmatpush1.msra.mxu0 0.0
        %1381 = vmatprep.subr.mxu0 0.0
        %1382 = vmatpush1.msra.mxu0 0.0
        %1383 = vmatprep.subr.mxu0 0.0
        %1384 = vmatpush1.msra.mxu0 0.0
        %1385 = vmatprep.subr.mxu0 0.0
        %1386 = vmatpush1.msra.mxu0 0.0
        %1387 = vmatprep.subr.mxu0 0.0
        %1388 = vmatpush1.msra.mxu0 0.0
        %1389 = vmatprep.subr.mxu0 0.0
        %1390 = vmatpush1.msra.mxu0 0.0
        %1391 = vmatprep.subr.mxu0 0.0
        %1392 = vmatpush1.msra.mxu0 0.0
        %1393 = vmatprep.subr.mxu0 0.0
        %1394 = vmatpush1.msra.mxu0 0.0
        %1395 = vmatprep.subr.mxu0 0.0
        %1396 = vmatpush1.msra.mxu0 0.0
        %1397 = vmatprep.subr.mxu0 0.0
        %1398 = vmatpush1.msra.mxu0 0.0
        %1399 = vmatprep.subr.mxu0 0.0
        %1400 = vmatpush1.msra.mxu0 0.0
        %1401 = vmatprep.subr.mxu0 0.0
        %1402 = vmatpush1.msra.mxu0 0.0
        %1403 = vmatprep.subr.mxu0 0.0
        %v1404 = vand.u32 %v314, 4294901760
        %v1405 = vsub.f32 %v314, %v1404
        %v1406 = vand.u32 %v1405, 4294901760
        %v1407 = vsub.f32 %v1405, %v1406
        %v1408 = vand.u32 %v1407, 4294901760
        %1409 = vmatpush1.msra.mxu0 %v1408
        %1410 = vmatprep.subr.mxu0 0.0
        %v1411 = vand.u32 %v313, 4294901760
        %v1412 = vsub.f32 %v313, %v1411
        %v1413 = vand.u32 %v1412, 4294901760
        %v1414 = vsub.f32 %v1412, %v1413
        %v1415 = vand.u32 %v1414, 4294901760
        %1416 = vmatpush1.msra.mxu0 %v1415
        %1417 = vmatprep.subr.mxu0 0.0
        %v1418 = vand.u32 %v312, 4294901760
        %v1419 = vsub.f32 %v312, %v1418
        %v1420 = vand.u32 %v1419, 4294901760
        %v1421 = vsub.f32 %v1419, %v1420
        %v1422 = vand.u32 %v1421, 4294901760
        %1423 = vmatpush1.msra.mxu0 %v1422
        %1424 = vmatprep.subr.mxu0 0.0
        %v1425 = vand.u32 %v311, 4294901760
        %v1426 = vsub.f32 %v311, %v1425
        %v1427 = vand.u32 %v1426, 4294901760
        %v1428 = vsub.f32 %v1426, %v1427
        %v1429 = vand.u32 %v1428, 4294901760
        %1430 = vmatpush1.msra.mxu0 %v1429
        %1431 = vmatprep.subr.mxu0 0.0
        %1432 = vmatpush2.msra.mxu0 0.0
        %1433 = vmatprep.subr.mxu0 0.0
        %1434 = vmatpush2.msra.mxu0 0.0
        %1435 = vmatprep.subr.mxu0 0.0
        %1436 = vmatpush2.msra.mxu0 0.0
        %1437 = vmatprep.subr.mxu0 0.0
        %1438 = vmatpush2.msra.mxu0 0.0
        %1439 = vmatprep.subr.mxu0 0.0
        %1440 = vmatpush2.msra.mxu0 0.0
        %1441 = vmatprep.subr.mxu0 0.0
        %1442 = vmatpush2.msra.mxu0 0.0
        %1443 = vmatprep.subr.mxu0 0.0
        %1444 = vmatpush2.msra.mxu0 0.0
        %1445 = vmatprep.subr.mxu0 0.0
        %1446 = vmatpush2.msra.mxu0 0.0
        %1447 = vmatprep.subr.mxu0 0.0
        %1448 = vmatpush2.msra.mxu0 0.0
        %1449 = vmatprep.subr.mxu0 0.0
        %1450 = vmatpush2.msra.mxu0 0.0
        %1451 = vmatprep.subr.mxu0 0.0
        %1452 = vmatpush2.msra.mxu0 0.0
        %1453 = vmatprep.subr.mxu0 0.0
        %1454 = vmatpush2.msra.mxu0 0.0
        %1455 = vmatprep.subr.mxu0 0.0
        %1456 = vmatpush2.msra.mxu0 0.0
        %1457 = vmatprep.subr.mxu0 0.0
        %1458 = vmatpush2.msra.mxu0 0.0
        %1459 = vmatprep.subr.mxu0 0.0
        %1460 = vmatpush2.msra.mxu0 0.0
        %1461 = vmatprep.subr.mxu0 0.0
        %1462 = vmatpush2.msra.mxu0 0.0
        %1463 = vmatprep.mubr.f32.mxu0 0.0
        %v1464 = vand.u32 %v1298, 4294901760
        %1465 = vmatmul.mubr.f32.gmra.mxu0 %v1464
        %v1466 = vpop.f32.mrf.mxu0
        %v1467 = vadd.f32 %v1376, %v1466
        %v1468 = vpop.f32.mrf.mxu0
        %1469 = vdwg.mxu0
        %1470 = vmatprep.subr.mxu0 0.0
        %1471 = vmatpush1.msra.mxu0 0.0
        %1472 = vmatprep.subr.mxu0 0.0
        %1473 = vmatpush1.msra.mxu0 0.0
        %1474 = vmatprep.subr.mxu0 0.0
        %1475 = vmatpush1.msra.mxu0 0.0
        %1476 = vmatprep.subr.mxu0 0.0
        %1477 = vmatpush1.msra.mxu0 0.0
        %1478 = vmatprep.subr.mxu0 0.0
        %1479 = vmatpush1.msra.mxu0 0.0
        %1480 = vmatprep.subr.mxu0 0.0
        %1481 = vmatpush1.msra.mxu0 0.0
        %1482 = vmatprep.subr.mxu0 0.0
        %1483 = vmatpush1.msra.mxu0 0.0
        %1484 = vmatprep.subr.mxu0 0.0
        %1485 = vmatpush1.msra.mxu0 0.0
        %1486 = vmatprep.subr.mxu0 0.0
        %1487 = vmatpush1.msra.mxu0 0.0
        %1488 = vmatprep.subr.mxu0 0.0
        %1489 = vmatpush1.msra.mxu0 0.0
        %1490 = vmatprep.subr.mxu0 0.0
        %1491 = vmatpush1.msra.mxu0 0.0
        %1492 = vmatprep.subr.mxu0 0.0
        %1493 = vmatpush1.msra.mxu0 0.0
        %1494 = vmatprep.subr.mxu0 0.0
        %v1495 = vand.u32 %v314, 4294901760
        %v1496 = vsub.f32 %v314, %v1495
        %1497 = vmatpush1.msra.mxu0 %v1496
        %1498 = vmatprep.subr.mxu0 0.0
        %v1499 = vand.u32 %v313, 4294901760
        %v1500 = vsub.f32 %v313, %v1499
        %1501 = vmatpush1.msra.mxu0 %v1500
        %1502 = vmatprep.subr.mxu0 0.0
        %v1503 = vand.u32 %v312, 4294901760
        %v1504 = vsub.f32 %v312, %v1503
        %1505 = vmatpush1.msra.mxu0 %v1504
        %1506 = vmatprep.subr.mxu0 0.0
        %v1507 = vand.u32 %v311, 4294901760
        %v1508 = vsub.f32 %v311, %v1507
        %1509 = vmatpush1.msra.mxu0 %v1508
        %1510 = vmatprep.subr.mxu0 0.0
        %1511 = vmatpush2.msra.mxu0 0.0
        %1512 = vmatprep.subr.mxu0 0.0
        %1513 = vmatpush2.msra.mxu0 0.0
        %1514 = vmatprep.subr.mxu0 0.0
        %1515 = vmatpush2.msra.mxu0 0.0
        %1516 = vmatprep.subr.mxu0 0.0
        %1517 = vmatpush2.msra.mxu0 0.0
        %1518 = vmatprep.subr.mxu0 0.0
        %1519 = vmatpush2.msra.mxu0 0.0
        %1520 = vmatprep.subr.mxu0 0.0
        %1521 = vmatpush2.msra.mxu0 0.0
        %1522 = vmatprep.subr.mxu0 0.0
        %1523 = vmatpush2.msra.mxu0 0.0
        %1524 = vmatprep.subr.mxu0 0.0
        %1525 = vmatpush2.msra.mxu0 0.0
        %1526 = vmatprep.subr.mxu0 0.0
        %1527 = vmatpush2.msra.mxu0 0.0
        %1528 = vmatprep.subr.mxu0 0.0
        %1529 = vmatpush2.msra.mxu0 0.0
        %1530 = vmatprep.subr.mxu0 0.0
        %1531 = vmatpush2.msra.mxu0 0.0
        %1532 = vmatprep.subr.mxu0 0.0
        %1533 = vmatpush2.msra.mxu0 0.0
        %1534 = vmatprep.subr.mxu0 0.0
        %1535 = vmatpush2.msra.mxu0 0.0
        %1536 = vmatprep.subr.mxu0 0.0
        %1537 = vmatpush2.msra.mxu0 0.0
        %1538 = vmatprep.subr.mxu0 0.0
        %1539 = vmatpush2.msra.mxu0 0.0
        %1540 = vmatprep.subr.mxu0 0.0
        %1541 = vmatpush2.msra.mxu0 0.0
        %1542 = vmatprep.mubr.f32.mxu0 0.0
        %v1543 = vand.u32 %v1298, 4294901760
        %v1544 = vsub.f32 %v1298, %v1543
        %1545 = vmatmul.mubr.f32.gmra.mxu0 %v1544
        %v1546 = vpop.f32.mrf.mxu0
        %v1547 = vadd.f32 %v1467, %v1546
        %v1548 = vpop.f32.mrf.mxu0
        %1549 = vdwg.mxu0
        %1550 = vmatprep.subr.mxu0 0.0
        %1551 = vmatpush1.msra.mxu0 0.0
        %1552 = vmatprep.subr.mxu0 0.0
        %1553 = vmatpush1.msra.mxu0 0.0
        %1554 = vmatprep.subr.mxu0 0.0
        %1555 = vmatpush1.msra.mxu0 0.0
        %1556 = vmatprep.subr.mxu0 0.0
        %1557 = vmatpush1.msra.mxu0 0.0
        %1558 = vmatprep.subr.mxu0 0.0
        %1559 = vmatpush1.msra.mxu0 0.0
        %1560 = vmatprep.subr.mxu0 0.0
        %1561 = vmatpush1.msra.mxu0 0.0
        %1562 = vmatprep.subr.mxu0 0.0
        %1563 = vmatpush1.msra.mxu0 0.0
        %1564 = vmatprep.subr.mxu0 0.0
        %1565 = vmatpush1.msra.mxu0 0.0
        %1566 = vmatprep.subr.mxu0 0.0
        %1567 = vmatpush1.msra.mxu0 0.0
        %1568 = vmatprep.subr.mxu0 0.0
        %1569 = vmatpush1.msra.mxu0 0.0
        %1570 = vmatprep.subr.mxu0 0.0
        %1571 = vmatpush1.msra.mxu0 0.0
        %1572 = vmatprep.subr.mxu0 0.0
        %1573 = vmatpush1.msra.mxu0 0.0
        %1574 = vmatprep.subr.mxu0 0.0
        %v1575 = vand.u32 %v314, 4294901760
        %1576 = vmatpush1.msra.mxu0 %v1575
        %1577 = vmatprep.subr.mxu0 0.0
        %v1578 = vand.u32 %v313, 4294901760
        %1579 = vmatpush1.msra.mxu0 %v1578
        %1580 = vmatprep.subr.mxu0 0.0
        %v1581 = vand.u32 %v312, 4294901760
        %1582 = vmatpush1.msra.mxu0 %v1581
        %1583 = vmatprep.subr.mxu0 0.0
        %v1584 = vand.u32 %v311, 4294901760
        %1585 = vmatpush1.msra.mxu0 %v1584
        %1586 = vmatprep.subr.mxu0 0.0
        %1587 = vmatpush2.msra.mxu0 0.0
        %1588 = vmatprep.subr.mxu0 0.0
        %1589 = vmatpush2.msra.mxu0 0.0
        %1590 = vmatprep.subr.mxu0 0.0
        %1591 = vmatpush2.msra.mxu0 0.0
        %1592 = vmatprep.subr.mxu0 0.0
        %1593 = vmatpush2.msra.mxu0 0.0
        %1594 = vmatprep.subr.mxu0 0.0
        %1595 = vmatpush2.msra.mxu0 0.0
        %1596 = vmatprep.subr.mxu0 0.0
        %1597 = vmatpush2.msra.mxu0 0.0
        %1598 = vmatprep.subr.mxu0 0.0
        %1599 = vmatpush2.msra.mxu0 0.0
        %1600 = vmatprep.subr.mxu0 0.0
        %1601 = vmatpush2.msra.mxu0 0.0
        %1602 = vmatprep.subr.mxu0 0.0
        %1603 = vmatpush2.msra.mxu0 0.0
        %1604 = vmatprep.subr.mxu0 0.0
        %1605 = vmatpush2.msra.mxu0 0.0
        %1606 = vmatprep.subr.mxu0 0.0
        %1607 = vmatpush2.msra.mxu0 0.0
        %1608 = vmatprep.subr.mxu0 0.0
        %1609 = vmatpush2.msra.mxu0 0.0
        %1610 = vmatprep.subr.mxu0 0.0
        %1611 = vmatpush2.msra.mxu0 0.0
        %1612 = vmatprep.subr.mxu0 0.0
        %1613 = vmatpush2.msra.mxu0 0.0
        %1614 = vmatprep.subr.mxu0 0.0
        %1615 = vmatpush2.msra.mxu0 0.0
        %1616 = vmatprep.subr.mxu0 0.0
        %1617 = vmatpush2.msra.mxu0 0.0
        %1618 = vmatprep.mubr.f32.mxu0 0.0
        %v1619 = vand.u32 %v1298, 4294901760
        %v1620 = vsub.f32 %v1298, %v1619
        %v1621 = vand.u32 %v1620, 4294901760
        %1622 = vmatmul.mubr.f32.gmra.mxu0 %v1621
        %v1623 = vpop.f32.mrf.mxu0
        %v1624 = vadd.f32 %v1547, %v1623
        %v1625 = vpop.f32.mrf.mxu0
        %1626 = vdwg.mxu0
        %1627 = vmatprep.subr.mxu0 0.0
        %1628 = vmatpush1.msra.mxu0 0.0
        %1629 = vmatprep.subr.mxu0 0.0
        %1630 = vmatpush1.msra.mxu0 0.0
        %1631 = vmatprep.subr.mxu0 0.0
        %1632 = vmatpush1.msra.mxu0 0.0
        %1633 = vmatprep.subr.mxu0 0.0
        %1634 = vmatpush1.msra.mxu0 0.0
        %1635 = vmatprep.subr.mxu0 0.0
        %1636 = vmatpush1.msra.mxu0 0.0
        %1637 = vmatprep.subr.mxu0 0.0
        %1638 = vmatpush1.msra.mxu0 0.0
        %1639 = vmatprep.subr.mxu0 0.0
        %1640 = vmatpush1.msra.mxu0 0.0
        %1641 = vmatprep.subr.mxu0 0.0
        %1642 = vmatpush1.msra.mxu0 0.0
        %1643 = vmatprep.subr.mxu0 0.0
        %1644 = vmatpush1.msra.mxu0 0.0
        %1645 = vmatprep.subr.mxu0 0.0
        %1646 = vmatpush1.msra.mxu0 0.0
        %1647 = vmatprep.subr.mxu0 0.0
        %1648 = vmatpush1.msra.mxu0 0.0
        %1649 = vmatprep.subr.mxu0 0.0
        %1650 = vmatpush1.msra.mxu0 0.0
        %1651 = vmatprep.subr.mxu0 0.0
        %v1652 = vand.u32 %v314, 4294901760
        %v1653 = vsub.f32 %v314, %v1652
        %v1654 = vand.u32 %v1653, 4294901760
        %1655 = vmatpush1.msra.mxu0 %v1654
        %1656 = vmatprep.subr.mxu0 0.0
        %v1657 = vand.u32 %v313, 4294901760
        %v1658 = vsub.f32 %v313, %v1657
        %v1659 = vand.u32 %v1658, 4294901760
        %1660 = vmatpush1.msra.mxu0 %v1659
        %1661 = vmatprep.subr.mxu0 0.0
        %v1662 = vand.u32 %v312, 4294901760
        %v1663 = vsub.f32 %v312, %v1662
        %v1664 = vand.u32 %v1663, 4294901760
        %1665 = vmatpush1.msra.mxu0 %v1664
        %1666 = vmatprep.subr.mxu0 0.0
        %v1667 = vand.u32 %v311, 4294901760
        %v1668 = vsub.f32 %v311, %v1667
        %v1669 = vand.u32 %v1668, 4294901760
        %1670 = vmatpush1.msra.mxu0 %v1669
        %1671 = vmatprep.subr.mxu0 0.0
        %1672 = vmatpush2.msra.mxu0 0.0
        %1673 = vmatprep.subr.mxu0 0.0
        %1674 = vmatpush2.msra.mxu0 0.0
        %1675 = vmatprep.subr.mxu0 0.0
        %1676 = vmatpush2.msra.mxu0 0.0
        %1677 = vmatprep.subr.mxu0 0.0
        %1678 = vmatpush2.msra.mxu0 0.0
        %1679 = vmatprep.subr.mxu0 0.0
        %1680 = vmatpush2.msra.mxu0 0.0
        %1681 = vmatprep.subr.mxu0 0.0
        %1682 = vmatpush2.msra.mxu0 0.0
        %1683 = vmatprep.subr.mxu0 0.0
        %1684 = vmatpush2.msra.mxu0 0.0
        %1685 = vmatprep.subr.mxu0 0.0
        %1686 = vmatpush2.msra.mxu0 0.0
        %1687 = vmatprep.subr.mxu0 0.0
        %1688 = vmatpush2.msra.mxu0 0.0
        %1689 = vmatprep.subr.mxu0 0.0
        %1690 = vmatpush2.msra.mxu0 0.0
        %1691 = vmatprep.subr.mxu0 0.0
        %1692 = vmatpush2.msra.mxu0 0.0
        %1693 = vmatprep.subr.mxu0 0.0
        %1694 = vmatpush2.msra.mxu0 0.0
        %1695 = vmatprep.subr.mxu0 0.0
        %1696 = vmatpush2.msra.mxu0 0.0
        %1697 = vmatprep.subr.mxu0 0.0
        %1698 = vmatpush2.msra.mxu0 0.0
        %1699 = vmatprep.subr.mxu0 0.0
        %1700 = vmatpush2.msra.mxu0 0.0
        %1701 = vmatprep.subr.mxu0 0.0
        %1702 = vmatpush2.msra.mxu0 0.0
        %1703 = vmatprep.mubr.f32.mxu0 0.0
        %v1704 = vand.u32 %v1298, 4294901760
        %1705 = vmatmul.mubr.f32.gmra.mxu0 %v1704
        %v1706 = vpop.f32.mrf.mxu0
        %v1707 = vadd.f32 %v1624, %v1706
        %v1708 = vpop.f32.mrf.mxu0
        %1709 = vdwg.mxu0
        %1710 = vmatprep.subr.mxu0 0.0
        %1711 = vmatpush1.msra.mxu0 0.0
        %1712 = vmatprep.subr.mxu0 0.0
        %1713 = vmatpush1.msra.mxu0 0.0
        %1714 = vmatprep.subr.mxu0 0.0
        %1715 = vmatpush1.msra.mxu0 0.0
        %1716 = vmatprep.subr.mxu0 0.0
        %1717 = vmatpush1.msra.mxu0 0.0
        %1718 = vmatprep.subr.mxu0 0.0
        %1719 = vmatpush1.msra.mxu0 0.0
        %1720 = vmatprep.subr.mxu0 0.0
        %1721 = vmatpush1.msra.mxu0 0.0
        %1722 = vmatprep.subr.mxu0 0.0
        %1723 = vmatpush1.msra.mxu0 0.0
        %1724 = vmatprep.subr.mxu0 0.0
        %1725 = vmatpush1.msra.mxu0 0.0
        %1726 = vmatprep.subr.mxu0 0.0
        %1727 = vmatpush1.msra.mxu0 0.0
        %1728 = vmatprep.subr.mxu0 0.0
        %1729 = vmatpush1.msra.mxu0 0.0
        %1730 = vmatprep.subr.mxu0 0.0
        %1731 = vmatpush1.msra.mxu0 0.0
        %1732 = vmatprep.subr.mxu0 0.0
        %1733 = vmatpush1.msra.mxu0 0.0
        %1734 = vmatprep.subr.mxu0 0.0
        %v1735 = vand.u32 %v314, 4294901760
        %1736 = vmatpush1.msra.mxu0 %v1735
        %1737 = vmatprep.subr.mxu0 0.0
        %v1738 = vand.u32 %v313, 4294901760
        %1739 = vmatpush1.msra.mxu0 %v1738
        %1740 = vmatprep.subr.mxu0 0.0
        %v1741 = vand.u32 %v312, 4294901760
        %1742 = vmatpush1.msra.mxu0 %v1741
        %1743 = vmatprep.subr.mxu0 0.0
        %v1744 = vand.u32 %v311, 4294901760
        %1745 = vmatpush1.msra.mxu0 %v1744
        %1746 = vmatprep.subr.mxu0 0.0
        %1747 = vmatpush2.msra.mxu0 0.0
        %1748 = vmatprep.subr.mxu0 0.0
        %1749 = vmatpush2.msra.mxu0 0.0
        %1750 = vmatprep.subr.mxu0 0.0
        %1751 = vmatpush2.msra.mxu0 0.0
        %1752 = vmatprep.subr.mxu0 0.0
        %1753 = vmatpush2.msra.mxu0 0.0
        %1754 = vmatprep.subr.mxu0 0.0
        %1755 = vmatpush2.msra.mxu0 0.0
        %1756 = vmatprep.subr.mxu0 0.0
        %1757 = vmatpush2.msra.mxu0 0.0
        %1758 = vmatprep.subr.mxu0 0.0
        %1759 = vmatpush2.msra.mxu0 0.0
        %1760 = vmatprep.subr.mxu0 0.0
        %1761 = vmatpush2.msra.mxu0 0.0
        %1762 = vmatprep.subr.mxu0 0.0
        %1763 = vmatpush2.msra.mxu0 0.0
        %1764 = vmatprep.subr.mxu0 0.0
        %1765 = vmatpush2.msra.mxu0 0.0
        %1766 = vmatprep.subr.mxu0 0.0
        %1767 = vmatpush2.msra.mxu0 0.0
        %1768 = vmatprep.subr.mxu0 0.0
        %1769 = vmatpush2.msra.mxu0 0.0
        %1770 = vmatprep.subr.mxu0 0.0
        %1771 = vmatpush2.msra.mxu0 0.0
        %1772 = vmatprep.subr.mxu0 0.0
        %1773 = vmatpush2.msra.mxu0 0.0
        %1774 = vmatprep.subr.mxu0 0.0
        %1775 = vmatpush2.msra.mxu0 0.0
        %1776 = vmatprep.subr.mxu0 0.0
        %1777 = vmatpush2.msra.mxu0 0.0
        %1778 = vmatprep.mubr.f32.mxu0 0.0
        %v1779 = vand.u32 %v1298, 4294901760
        %1780 = vmatmul.mubr.f32.gmra.mxu0 %v1779
        %v1781 = vpop.f32.mrf.mxu0
        %v1782 = vadd.f32 %v1707, %v1781
        %v1783 = vpop.f32.mrf.mxu0
        %1784 = vdwg.mxu0
        %v1785 = vmul.f32 %v1782, 0.17677669
        %v1786 = vld [vmem:[%s263] sm:$0xff]
        %v1788 = vsel %vm316, %v1786, 0
        %1790 = vmatprep.subr.mxu0 0.0
        %1791 = vmatpush1.msra.mxu0 0.0
        %1792 = vmatprep.subr.mxu0 0.0
        %1793 = vmatpush1.msra.mxu0 0.0
        %1794 = vmatprep.subr.mxu0 0.0
        %1795 = vmatpush1.msra.mxu0 0.0
        %1796 = vmatprep.subr.mxu0 0.0
        %1797 = vmatpush1.msra.mxu0 0.0
        %1798 = vmatprep.subr.mxu0 0.0
        %1799 = vmatpush1.msra.mxu0 0.0
        %1800 = vmatprep.subr.mxu0 0.0
        %1801 = vmatpush1.msra.mxu0 0.0
        %1802 = vmatprep.subr.mxu0 0.0
        %1803 = vmatpush1.msra.mxu0 0.0
        %1804 = vmatprep.subr.mxu0 0.0
        %1805 = vmatpush1.msra.mxu0 0.0
        %1806 = vmatprep.subr.mxu0 0.0
        %1807 = vmatpush1.msra.mxu0 0.0
        %1808 = vmatprep.subr.mxu0 0.0
        %1809 = vmatpush1.msra.mxu0 0.0
        %1810 = vmatprep.subr.mxu0 0.0
        %1811 = vmatpush1.msra.mxu0 0.0
        %1812 = vmatprep.subr.mxu0 0.0
        %1813 = vmatpush1.msra.mxu0 0.0
        %1814 = vmatprep.subr.mxu0 0.0
        %v1815 = vand.u32 %v314, 4294901760
        %1816 = vmatpush1.msra.mxu0 %v1815
        %1817 = vmatprep.subr.mxu0 0.0
        %v1818 = vand.u32 %v313, 4294901760
        %1819 = vmatpush1.msra.mxu0 %v1818
        %1820 = vmatprep.subr.mxu0 0.0
        %v1821 = vand.u32 %v312, 4294901760
        %1822 = vmatpush1.msra.mxu0 %v1821
        %1823 = vmatprep.subr.mxu0 0.0
        %v1824 = vand.u32 %v311, 4294901760
        %1825 = vmatpush1.msra.mxu0 %v1824
        %1826 = vmatprep.subr.mxu0 0.0
        %1827 = vmatpush2.msra.mxu0 0.0
        %1828 = vmatprep.subr.mxu0 0.0
        %1829 = vmatpush2.msra.mxu0 0.0
        %1830 = vmatprep.subr.mxu0 0.0
        %1831 = vmatpush2.msra.mxu0 0.0
        %1832 = vmatprep.subr.mxu0 0.0
        %1833 = vmatpush2.msra.mxu0 0.0
        %1834 = vmatprep.subr.mxu0 0.0
        %1835 = vmatpush2.msra.mxu0 0.0
        %1836 = vmatprep.subr.mxu0 0.0
        %1837 = vmatpush2.msra.mxu0 0.0
        %1838 = vmatprep.subr.mxu0 0.0
        %1839 = vmatpush2.msra.mxu0 0.0
        %1840 = vmatprep.subr.mxu0 0.0
        %1841 = vmatpush2.msra.mxu0 0.0
        %1842 = vmatprep.subr.mxu0 0.0
        %1843 = vmatpush2.msra.mxu0 0.0
        %1844 = vmatprep.subr.mxu0 0.0
        %1845 = vmatpush2.msra.mxu0 0.0
        %1846 = vmatprep.subr.mxu0 0.0
        %1847 = vmatpush2.msra.mxu0 0.0
        %1848 = vmatprep.subr.mxu0 0.0
        %1849 = vmatpush2.msra.mxu0 0.0
        %1850 = vmatprep.subr.mxu0 0.0
        %1851 = vmatpush2.msra.mxu0 0.0
        %1852 = vmatprep.subr.mxu0 0.0
        %1853 = vmatpush2.msra.mxu0 0.0
        %1854 = vmatprep.subr.mxu0 0.0
        %1855 = vmatpush2.msra.mxu0 0.0
        %1856 = vmatprep.subr.mxu0 0.0
        %1857 = vmatpush2.msra.mxu0 0.0
        %1858 = vmatprep.mubr.f32.mxu0 0.0
        %v1859 = vand.u32 %v1788, 4294901760
        %v1860 = vsub.f32 %v1788, %v1859
        %v1861 = vand.u32 %v1860, 4294901760
        %v1862 = vsub.f32 %v1860, %v1861
        %v1863 = vand.u32 %v1862, 4294901760
        %1864 = vmatmul.mubr.f32.gmra.mxu0 %v1863
        %v1865 = vpop.f32.mrf.mxu0
        %v1866 = vadd.f32 0.0, %v1865
        %v1867 = vpop.f32.mrf.mxu0
        %1868 = vdwg.mxu0
        %1869 = vmatprep.subr.mxu0 0.0
        %1870 = vmatpush1.msra.mxu0 0.0
        %1871 = vmatprep.subr.mxu0 0.0
        %1872 = vmatpush1.msra.mxu0 0.0
        %1873 = vmatprep.subr.mxu0 0.0
        %1874 = vmatpush1.msra.mxu0 0.0
        %1875 = vmatprep.subr.mxu0 0.0
        %1876 = vmatpush1.msra.mxu0 0.0
        %1877 = vmatprep.subr.mxu0 0.0
        %1878 = vmatpush1.msra.mxu0 0.0
        %1879 = vmatprep.subr.mxu0 0.0
        %1880 = vmatpush1.msra.mxu0 0.0
        %1881 = vmatprep.subr.mxu0 0.0
        %1882 = vmatpush1.msra.mxu0 0.0
        %1883 = vmatprep.subr.mxu0 0.0
        %1884 = vmatpush1.msra.mxu0 0.0
        %1885 = vmatprep.subr.mxu0 0.0
        %1886 = vmatpush1.msra.mxu0 0.0
        %1887 = vmatprep.subr.mxu0 0.0
        %1888 = vmatpush1.msra.mxu0 0.0
        %1889 = vmatprep.subr.mxu0 0.0
        %1890 = vmatpush1.msra.mxu0 0.0
        %1891 = vmatprep.subr.mxu0 0.0
        %1892 = vmatpush1.msra.mxu0 0.0
        %1893 = vmatprep.subr.mxu0 0.0
        %v1894 = vand.u32 %v314, 4294901760
        %v1895 = vsub.f32 %v314, %v1894
        %v1896 = vand.u32 %v1895, 4294901760
        %v1897 = vsub.f32 %v1895, %v1896
        %v1898 = vand.u32 %v1897, 4294901760
        %1899 = vmatpush1.msra.mxu0 %v1898
        %1900 = vmatprep.subr.mxu0 0.0
        %v1901 = vand.u32 %v313, 4294901760
        %v1902 = vsub.f32 %v313, %v1901
        %v1903 = vand.u32 %v1902, 4294901760
        %v1904 = vsub.f32 %v1902, %v1903
        %v1905 = vand.u32 %v1904, 4294901760
        %1906 = vmatpush1.msra.mxu0 %v1905
        %1907 = vmatprep.subr.mxu0 0.0
        %v1908 = vand.u32 %v312, 4294901760
        %v1909 = vsub.f32 %v312, %v1908
        %v1910 = vand.u32 %v1909, 4294901760
        %v1911 = vsub.f32 %v1909, %v1910
        %v1912 = vand.u32 %v1911, 4294901760
        %1913 = vmatpush1.msra.mxu0 %v1912
        %1914 = vmatprep.subr.mxu0 0.0
        %v1915 = vand.u32 %v311, 4294901760
        %v1916 = vsub.f32 %v311, %v1915
        %v1917 = vand.u32 %v1916, 4294901760
        %v1918 = vsub.f32 %v1916, %v1917
        %v1919 = vand.u32 %v1918, 4294901760
        %1920 = vmatpush1.msra.mxu0 %v1919
        %1921 = vmatprep.subr.mxu0 0.0
        %1922 = vmatpush2.msra.mxu0 0.0
        %1923 = vmatprep.subr.mxu0 0.0
        %1924 = vmatpush2.msra.mxu0 0.0
        %1925 = vmatprep.subr.mxu0 0.0
        %1926 = vmatpush2.msra.mxu0 0.0
        %1927 = vmatprep.subr.mxu0 0.0
        %1928 = vmatpush2.msra.mxu0 0.0
        %1929 = vmatprep.subr.mxu0 0.0
        %1930 = vmatpush2.msra.mxu0 0.0
        %1931 = vmatprep.subr.mxu0 0.0
        %1932 = vmatpush2.msra.mxu0 0.0
        %1933 = vmatprep.subr.mxu0 0.0
        %1934 = vmatpush2.msra.mxu0 0.0
        %1935 = vmatprep.subr.mxu0 0.0
        %1936 = vmatpush2.msra.mxu0 0.0
        %1937 = vmatprep.subr.mxu0 0.0
        %1938 = vmatpush2.msra.mxu0 0.0
        %1939 = vmatprep.subr.mxu0 0.0
        %1940 = vmatpush2.msra.mxu0 0.0
        %1941 = vmatprep.subr.mxu0 0.0
        %1942 = vmatpush2.msra.mxu0 0.0
        %1943 = vmatprep.subr.mxu0 0.0
        %1944 = vmatpush2.msra.mxu0 0.0
        %1945 = vmatprep.subr.mxu0 0.0
        %1946 = vmatpush2.msra.mxu0 0.0
        %1947 = vmatprep.subr.mxu0 0.0
        %1948 = vmatpush2.msra.mxu0 0.0
        %1949 = vmatprep.subr.mxu0 0.0
        %1950 = vmatpush2.msra.mxu0 0.0
        %1951 = vmatprep.subr.mxu0 0.0
        %1952 = vmatpush2.msra.mxu0 0.0
        %1953 = vmatprep.mubr.f32.mxu0 0.0
        %v1954 = vand.u32 %v1788, 4294901760
        %1955 = vmatmul.mubr.f32.gmra.mxu0 %v1954
        %v1956 = vpop.f32.mrf.mxu0
        %v1957 = vadd.f32 %v1866, %v1956
        %v1958 = vpop.f32.mrf.mxu0
        %1959 = vdwg.mxu0
        %1960 = vmatprep.subr.mxu0 0.0
        %1961 = vmatpush1.msra.mxu0 0.0
        %1962 = vmatprep.subr.mxu0 0.0
        %1963 = vmatpush1.msra.mxu0 0.0
        %1964 = vmatprep.subr.mxu0 0.0
        %1965 = vmatpush1.msra.mxu0 0.0
        %1966 = vmatprep.subr.mxu0 0.0
        %1967 = vmatpush1.msra.mxu0 0.0
        %1968 = vmatprep.subr.mxu0 0.0
        %1969 = vmatpush1.msra.mxu0 0.0
        %1970 = vmatprep.subr.mxu0 0.0
        %1971 = vmatpush1.msra.mxu0 0.0
        %1972 = vmatprep.subr.mxu0 0.0
        %1973 = vmatpush1.msra.mxu0 0.0
        %1974 = vmatprep.subr.mxu0 0.0
        %1975 = vmatpush1.msra.mxu0 0.0
        %1976 = vmatprep.subr.mxu0 0.0
        %1977 = vmatpush1.msra.mxu0 0.0
        %1978 = vmatprep.subr.mxu0 0.0
        %1979 = vmatpush1.msra.mxu0 0.0
        %1980 = vmatprep.subr.mxu0 0.0
        %1981 = vmatpush1.msra.mxu0 0.0
        %1982 = vmatprep.subr.mxu0 0.0
        %1983 = vmatpush1.msra.mxu0 0.0
        %1984 = vmatprep.subr.mxu0 0.0
        %v1985 = vand.u32 %v314, 4294901760
        %v1986 = vsub.f32 %v314, %v1985
        %1987 = vmatpush1.msra.mxu0 %v1986
        %1988 = vmatprep.subr.mxu0 0.0
        %v1989 = vand.u32 %v313, 4294901760
        %v1990 = vsub.f32 %v313, %v1989
        %1991 = vmatpush1.msra.mxu0 %v1990
        %1992 = vmatprep.subr.mxu0 0.0
        %v1993 = vand.u32 %v312, 4294901760
        %v1994 = vsub.f32 %v312, %v1993
        %1995 = vmatpush1.msra.mxu0 %v1994
        %1996 = vmatprep.subr.mxu0 0.0
        %v1997 = vand.u32 %v311, 4294901760
        %v1998 = vsub.f32 %v311, %v1997
        %1999 = vmatpush1.msra.mxu0 %v1998
        %2000 = vmatprep.subr.mxu0 0.0
        %2001 = vmatpush2.msra.mxu0 0.0
        %2002 = vmatprep.subr.mxu0 0.0
        %2003 = vmatpush2.msra.mxu0 0.0
        %2004 = vmatprep.subr.mxu0 0.0
        %2005 = vmatpush2.msra.mxu0 0.0
        %2006 = vmatprep.subr.mxu0 0.0
        %2007 = vmatpush2.msra.mxu0 0.0
        %2008 = vmatprep.subr.mxu0 0.0
        %2009 = vmatpush2.msra.mxu0 0.0
        %2010 = vmatprep.subr.mxu0 0.0
        %2011 = vmatpush2.msra.mxu0 0.0
        %2012 = vmatprep.subr.mxu0 0.0
        %2013 = vmatpush2.msra.mxu0 0.0
        %2014 = vmatprep.subr.mxu0 0.0
        %2015 = vmatpush2.msra.mxu0 0.0
        %2016 = vmatprep.subr.mxu0 0.0
        %2017 = vmatpush2.msra.mxu0 0.0
        %2018 = vmatprep.subr.mxu0 0.0
        %2019 = vmatpush2.msra.mxu0 0.0
        %2020 = vmatprep.subr.mxu0 0.0
        %2021 = vmatpush2.msra.mxu0 0.0
        %2022 = vmatprep.subr.mxu0 0.0
        %2023 = vmatpush2.msra.mxu0 0.0
        %2024 = vmatprep.subr.mxu0 0.0
        %2025 = vmatpush2.msra.mxu0 0.0
        %2026 = vmatprep.subr.mxu0 0.0
        %2027 = vmatpush2.msra.mxu0 0.0
        %2028 = vmatprep.subr.mxu0 0.0
        %2029 = vmatpush2.msra.mxu0 0.0
        %2030 = vmatprep.subr.mxu0 0.0
        %2031 = vmatpush2.msra.mxu0 0.0
        %2032 = vmatprep.mubr.f32.mxu0 0.0
        %v2033 = vand.u32 %v1788, 4294901760
        %v2034 = vsub.f32 %v1788, %v2033
        %2035 = vmatmul.mubr.f32.gmra.mxu0 %v2034
        %v2036 = vpop.f32.mrf.mxu0
        %v2037 = vadd.f32 %v1957, %v2036
        %v2038 = vpop.f32.mrf.mxu0
        %2039 = vdwg.mxu0
        %2040 = vmatprep.subr.mxu0 0.0
        %2041 = vmatpush1.msra.mxu0 0.0
        %2042 = vmatprep.subr.mxu0 0.0
        %2043 = vmatpush1.msra.mxu0 0.0
        %2044 = vmatprep.subr.mxu0 0.0
        %2045 = vmatpush1.msra.mxu0 0.0
        %2046 = vmatprep.subr.mxu0 0.0
        %2047 = vmatpush1.msra.mxu0 0.0
        %2048 = vmatprep.subr.mxu0 0.0
        %2049 = vmatpush1.msra.mxu0 0.0
        %2050 = vmatprep.subr.mxu0 0.0
        %2051 = vmatpush1.msra.mxu0 0.0
        %2052 = vmatprep.subr.mxu0 0.0
        %2053 = vmatpush1.msra.mxu0 0.0
        %2054 = vmatprep.subr.mxu0 0.0
        %2055 = vmatpush1.msra.mxu0 0.0
        %2056 = vmatprep.subr.mxu0 0.0
        %2057 = vmatpush1.msra.mxu0 0.0
        %2058 = vmatprep.subr.mxu0 0.0
        %2059 = vmatpush1.msra.mxu0 0.0
        %2060 = vmatprep.subr.mxu0 0.0
        %2061 = vmatpush1.msra.mxu0 0.0
        %2062 = vmatprep.subr.mxu0 0.0
        %2063 = vmatpush1.msra.mxu0 0.0
        %2064 = vmatprep.subr.mxu0 0.0
        %v2065 = vand.u32 %v314, 4294901760
        %2066 = vmatpush1.msra.mxu0 %v2065
        %2067 = vmatprep.subr.mxu0 0.0
        %v2068 = vand.u32 %v313, 4294901760
        %2069 = vmatpush1.msra.mxu0 %v2068
        %2070 = vmatprep.subr.mxu0 0.0
        %v2071 = vand.u32 %v312, 4294901760
        %2072 = vmatpush1.msra.mxu0 %v2071
        %2073 = vmatprep.subr.mxu0 0.0
        %v2074 = vand.u32 %v311, 4294901760
        %2075 = vmatpush1.msra.mxu0 %v2074
        %2076 = vmatprep.subr.mxu0 0.0
        %2077 = vmatpush2.msra.mxu0 0.0
        %2078 = vmatprep.subr.mxu0 0.0
        %2079 = vmatpush2.msra.mxu0 0.0
        %2080 = vmatprep.subr.mxu0 0.0
        %2081 = vmatpush2.msra.mxu0 0.0
        %2082 = vmatprep.subr.mxu0 0.0
        %2083 = vmatpush2.msra.mxu0 0.0
        %2084 = vmatprep.subr.mxu0 0.0
        %2085 = vmatpush2.msra.mxu0 0.0
        %2086 = vmatprep.subr.mxu0 0.0
        %2087 = vmatpush2.msra.mxu0 0.0
        %2088 = vmatprep.subr.mxu0 0.0
        %2089 = vmatpush2.msra.mxu0 0.0
        %2090 = vmatprep.subr.mxu0 0.0
        %2091 = vmatpush2.msra.mxu0 0.0
        %2092 = vmatprep.subr.mxu0 0.0
        %2093 = vmatpush2.msra.mxu0 0.0
        %2094 = vmatprep.subr.mxu0 0.0
        %2095 = vmatpush2.msra.mxu0 0.0
        %2096 = vmatprep.subr.mxu0 0.0
        %2097 = vmatpush2.msra.mxu0 0.0
        %2098 = vmatprep.subr.mxu0 0.0
        %2099 = vmatpush2.msra.mxu0 0.0
        %2100 = vmatprep.subr.mxu0 0.0
        %2101 = vmatpush2.msra.mxu0 0.0
        %2102 = vmatprep.subr.mxu0 0.0
        %2103 = vmatpush2.msra.mxu0 0.0
        %2104 = vmatprep.subr.mxu0 0.0
        %2105 = vmatpush2.msra.mxu0 0.0
        %2106 = vmatprep.subr.mxu0 0.0
        %2107 = vmatpush2.msra.mxu0 0.0
        %2108 = vmatprep.mubr.f32.mxu0 0.0
        %v2109 = vand.u32 %v1788, 4294901760
        %v2110 = vsub.f32 %v1788, %v2109
        %v2111 = vand.u32 %v2110, 4294901760
        %2112 = vmatmul.mubr.f32.gmra.mxu0 %v2111
        %v2113 = vpop.f32.mrf.mxu0
        %v2114 = vadd.f32 %v2037, %v2113
        %v2115 = vpop.f32.mrf.mxu0
        %2116 = vdwg.mxu0
        %2117 = vmatprep.subr.mxu0 0.0
        %2118 = vmatpush1.msra.mxu0 0.0
        %2119 = vmatprep.subr.mxu0 0.0
        %2120 = vmatpush1.msra.mxu0 0.0
        %2121 = vmatprep.subr.mxu0 0.0
        %2122 = vmatpush1.msra.mxu0 0.0
        %2123 = vmatprep.subr.mxu0 0.0
        %2124 = vmatpush1.msra.mxu0 0.0
        %2125 = vmatprep.subr.mxu0 0.0
        %2126 = vmatpush1.msra.mxu0 0.0
        %2127 = vmatprep.subr.mxu0 0.0
        %2128 = vmatpush1.msra.mxu0 0.0
        %2129 = vmatprep.subr.mxu0 0.0
        %2130 = vmatpush1.msra.mxu0 0.0
        %2131 = vmatprep.subr.mxu0 0.0
        %2132 = vmatpush1.msra.mxu0 0.0
        %2133 = vmatprep.subr.mxu0 0.0
        %2134 = vmatpush1.msra.mxu0 0.0
        %2135 = vmatprep.subr.mxu0 0.0
        %2136 = vmatpush1.msra.mxu0 0.0
        %2137 = vmatprep.subr.mxu0 0.0
        %2138 = vmatpush1.msra.mxu0 0.0
        %2139 = vmatprep.subr.mxu0 0.0
        %2140 = vmatpush1.msra.mxu0 0.0
        %2141 = vmatprep.subr.mxu0 0.0
        %v2142 = vand.u32 %v314, 4294901760
        %v2143 = vsub.f32 %v314, %v2142
        %v2144 = vand.u32 %v2143, 4294901760
        %2145 = vmatpush1.msra.mxu0 %v2144
        %2146 = vmatprep.subr.mxu0 0.0
        %v2147 = vand.u32 %v313, 4294901760
        %v2148 = vsub.f32 %v313, %v2147
        %v2149 = vand.u32 %v2148, 4294901760
        %2150 = vmatpush1.msra.mxu0 %v2149
        %2151 = vmatprep.subr.mxu0 0.0
        %v2152 = vand.u32 %v312, 4294901760
        %v2153 = vsub.f32 %v312, %v2152
        %v2154 = vand.u32 %v2153, 4294901760
        %2155 = vmatpush1.msra.mxu0 %v2154
        %2156 = vmatprep.subr.mxu0 0.0
        %v2157 = vand.u32 %v311, 4294901760
        %v2158 = vsub.f32 %v311, %v2157
        %v2159 = vand.u32 %v2158, 4294901760
        %2160 = vmatpush1.msra.mxu0 %v2159
        %2161 = vmatprep.subr.mxu0 0.0
        %2162 = vmatpush2.msra.mxu0 0.0
        %2163 = vmatprep.subr.mxu0 0.0
        %2164 = vmatpush2.msra.mxu0 0.0
        %2165 = vmatprep.subr.mxu0 0.0
        %2166 = vmatpush2.msra.mxu0 0.0
        %2167 = vmatprep.subr.mxu0 0.0
        %2168 = vmatpush2.msra.mxu0 0.0
        %2169 = vmatprep.subr.mxu0 0.0
        %2170 = vmatpush2.msra.mxu0 0.0
        %2171 = vmatprep.subr.mxu0 0.0
        %2172 = vmatpush2.msra.mxu0 0.0
        %2173 = vmatprep.subr.mxu0 0.0
        %2174 = vmatpush2.msra.mxu0 0.0
        %2175 = vmatprep.subr.mxu0 0.0
        %2176 = vmatpush2.msra.mxu0 0.0
        %2177 = vmatprep.subr.mxu0 0.0
        %2178 = vmatpush2.msra.mxu0 0.0
        %2179 = vmatprep.subr.mxu0 0.0
        %2180 = vmatpush2.msra.mxu0 0.0
        %2181 = vmatprep.subr.mxu0 0.0
        %2182 = vmatpush2.msra.mxu0 0.0
        %2183 = vmatprep.subr.mxu0 0.0
        %2184 = vmatpush2.msra.mxu0 0.0
        %2185 = vmatprep.subr.mxu0 0.0
        %2186 = vmatpush2.msra.mxu0 0.0
        %2187 = vmatprep.subr.mxu0 0.0
        %2188 = vmatpush2.msra.mxu0 0.0
        %2189 = vmatprep.subr.mxu0 0.0
        %2190 = vmatpush2.msra.mxu0 0.0
        %2191 = vmatprep.subr.mxu0 0.0
        %2192 = vmatpush2.msra.mxu0 0.0
        %2193 = vmatprep.mubr.f32.mxu0 0.0
        %v2194 = vand.u32 %v1788, 4294901760
        %2195 = vmatmul.mubr.f32.gmra.mxu0 %v2194
        %v2196 = vpop.f32.mrf.mxu0
        %v2197 = vadd.f32 %v2114, %v2196
        %v2198 = vpop.f32.mrf.mxu0
        %2199 = vdwg.mxu0
        %2200 = vmatprep.subr.mxu0 0.0
        %2201 = vmatpush1.msra.mxu0 0.0
        %2202 = vmatprep.subr.mxu0 0.0
        %2203 = vmatpush1.msra.mxu0 0.0
        %2204 = vmatprep.subr.mxu0 0.0
        %2205 = vmatpush1.msra.mxu0 0.0
        %2206 = vmatprep.subr.mxu0 0.0
        %2207 = vmatpush1.msra.mxu0 0.0
        %2208 = vmatprep.subr.mxu0 0.0
        %2209 = vmatpush1.msra.mxu0 0.0
        %2210 = vmatprep.subr.mxu0 0.0
        %2211 = vmatpush1.msra.mxu0 0.0
        %2212 = vmatprep.subr.mxu0 0.0
        %2213 = vmatpush1.msra.mxu0 0.0
        %2214 = vmatprep.subr.mxu0 0.0
        %2215 = vmatpush1.msra.mxu0 0.0
        %2216 = vmatprep.subr.mxu0 0.0
        %2217 = vmatpush1.msra.mxu0 0.0
        %2218 = vmatprep.subr.mxu0 0.0
        %2219 = vmatpush1.msra.mxu0 0.0
        %2220 = vmatprep.subr.mxu0 0.0
        %2221 = vmatpush1.msra.mxu0 0.0
        %2222 = vmatprep.subr.mxu0 0.0
        %2223 = vmatpush1.msra.mxu0 0.0
        %2224 = vmatprep.subr.mxu0 0.0
        %v2225 = vand.u32 %v314, 4294901760
        %2226 = vmatpush1.msra.mxu0 %v2225
        %2227 = vmatprep.subr.mxu0 0.0
        %v2228 = vand.u32 %v313, 4294901760
        %2229 = vmatpush1.msra.mxu0 %v2228
        %2230 = vmatprep.subr.mxu0 0.0
        %v2231 = vand.u32 %v312, 4294901760
        %2232 = vmatpush1.msra.mxu0 %v2231
        %2233 = vmatprep.subr.mxu0 0.0
        %v2234 = vand.u32 %v311, 4294901760
        %2235 = vmatpush1.msra.mxu0 %v2234
        %2236 = vmatprep.subr.mxu0 0.0
        %2237 = vmatpush2.msra.mxu0 0.0
        %2238 = vmatprep.subr.mxu0 0.0
        %2239 = vmatpush2.msra.mxu0 0.0
        %2240 = vmatprep.subr.mxu0 0.0
        %2241 = vmatpush2.msra.mxu0 0.0
        %2242 = vmatprep.subr.mxu0 0.0
        %2243 = vmatpush2.msra.mxu0 0.0
        %2244 = vmatprep.subr.mxu0 0.0
        %2245 = vmatpush2.msra.mxu0 0.0
        %2246 = vmatprep.subr.mxu0 0.0
        %2247 = vmatpush2.msra.mxu0 0.0
        %2248 = vmatprep.subr.mxu0 0.0
        %2249 = vmatpush2.msra.mxu0 0.0
        %2250 = vmatprep.subr.mxu0 0.0
        %2251 = vmatpush2.msra.mxu0 0.0
        %2252 = vmatprep.subr.mxu0 0.0
        %2253 = vmatpush2.msra.mxu0 0.0
        %2254 = vmatprep.subr.mxu0 0.0
        %2255 = vmatpush2.msra.mxu0 0.0
        %2256 = vmatprep.subr.mxu0 0.0
        %2257 = vmatpush2.msra.mxu0 0.0
        %2258 = vmatprep.subr.mxu0 0.0
        %2259 = vmatpush2.msra.mxu0 0.0
        %2260 = vmatprep.subr.mxu0 0.0
        %2261 = vmatpush2.msra.mxu0 0.0
        %2262 = vmatprep.subr.mxu0 0.0
        %2263 = vmatpush2.msra.mxu0 0.0
        %2264 = vmatprep.subr.mxu0 0.0
        %2265 = vmatpush2.msra.mxu0 0.0
        %2266 = vmatprep.subr.mxu0 0.0
        %2267 = vmatpush2.msra.mxu0 0.0
        %2268 = vmatprep.mubr.f32.mxu0 0.0
        %v2269 = vand.u32 %v1788, 4294901760
        %2270 = vmatmul.mubr.f32.gmra.mxu0 %v2269
        %v2271 = vpop.f32.mrf.mxu0
        %v2272 = vadd.f32 %v2197, %v2271
        %v2273 = vpop.f32.mrf.mxu0
        %2274 = vdwg.mxu0
        %v2275 = vmul.f32 %v2272, 0.17677669
        %v2276 = vmax.f32 %v805, %v1295
        %v2277 = vmax.f32 %v2276, %v1785
        %v2278 = vmax.f32 %v2277, %v2275
        %v2279 = vsub.f32 %v805, %v2278
        %v2280 = vmul.f32 %v2279, 1.442695
        %v2281 = vpow.pop %v2280
        %v2282 = vsub.f32 %v1295, %v2278
        %v2283 = vmul.f32 %v2282, 1.442695
        %v2284 = vpow.pop %v2283
        %v2285 = vsub.f32 %v1785, %v2278
        %v2286 = vmul.f32 %v2285, 1.442695
        %v2287 = vpow.pop %v2286
        %v2288 = vsub.f32 %v2275, %v2278
        %v2289 = vmul.f32 %v2288, 1.442695
        %v2290 = vpow.pop %v2289
        %v2291 = vadd.f32 %v2281, %v2284
        %v2292 = vadd.f32 %v2291, %v2287
        %v2293 = vadd.f32 %v2292, %v2290
        %v2294 = vrcp.pop %v2293
        %v2295 = vmul.f32 1.0, %v2294
        %v2296 = vmul.f32 %v2281, %v2295
        %2298 = vset.pattern.permute.xlu0 0
        %2299 = vperm.xlu0 %2298, %v2296
        %v2300 = vpop.permute.xlu0 %2299
        %v2302 = vmul.f32 %v315, %v2300
        %v2303 = vmul.f32 %v2284, %v2295
        %2305 = vset.pattern.permute.xlu0 0
        %2306 = vperm.xlu0 %2305, %v2303
        %v2307 = vpop.permute.xlu0 %2306
        %v2309 = vmul.f32 %v806, %v2307
        %v2310 = vadd.f32 %v2302, %v2309
        %v2311 = vmul.f32 %v2287, %v2295
        %2313 = vset.pattern.permute.xlu0 0
        %2314 = vperm.xlu0 %2313, %v2311
        %v2315 = vpop.permute.xlu0 %2314
        %v2317 = vmul.f32 %v1296, %v2315
        %v2318 = vadd.f32 %v2310, %v2317
        %v2319 = vmul.f32 %v2290, %v2295
        %2321 = vset.pattern.permute.xlu0 0
        %2322 = vperm.xlu0 %2321, %v2319
        %v2323 = vpop.permute.xlu0 %2322
        %v2325 = vmul.f32 %v1786, %v2323
        %v2326 = vadd.f32 %v2318, %v2325
        %2327 = vst.msk [vmem:[%s302] sm:$0xff] %vm316, %v2326
        %s2328 = sand.u32 %s158, 1
        %s2329 = scalar_lea.sflag [#allocation4], %s2328
        %s2330 = sand.u32 %s158, 1
        %s2331 = smul.addr %s2330, 8
        %s2332 = scalar_lea.vmem [#allocation7], %s2331
        // Predicated region
        $region49: #{tpu_custom_call.1} parent=39 // pred_check
          %p2333 = pneg %p168
        $region50: #{tpu_custom_call.1} parent=39 // pred_check_branch
          %2335 = sbr.rel (%p2333) target = $region52
        $region51: #{tpu_custom_call.1} parent=39 // pred_region
          %s2337 = ssub.s32 128, 128
          %2338 = vsyncadd %s2329, %s2337
          %s2339 = smul.addr %s25, 128
          %s2340 = scalar_lea.hbm %s5, %s2339
          %s2342 = sshll.u32 %s2332, 4
          %s2343 = int_to_ptr.vmem [resolvable:$true] %s2342
          %2345 = dma.vmem_to_hbm [thread:$0]  %s2343, 128, %s2340, %s2329
        $region52: #{tpu_custom_call.1} parent=39 // pred_fallthru
          _
      $region40: #{tpu_custom_call.1} parent=5 // pred_fallthru
        _
      %p2346 = scmp.le.s32.totalorder 2, %s20
      // Predicated region
      $region53: #{tpu_custom_call.1} parent=5 // pred_check
        %p2347 = pneg %p2346
      $region54: #{tpu_custom_call.1} parent=5 // pred_check_branch
        %2349 = sbr.rel (%p2347) target = $region56
      $region55: #{tpu_custom_call.1} parent=5 // pred_region
        %s2350 = ssub.s32 %s20, 2
        // Predicated region
        $region57: #{tpu_custom_call.1} parent=55 // pred_check
          %p2351 = pneg %p174
        $region58: #{tpu_custom_call.1} parent=55 // pred_check_branch
          %2353 = sbr.rel (%p2351) target = $region60
        $region59: #{tpu_custom_call.1} parent=55 // pred_region
          %s2354 = sand.u32 %s159, 1
          %s2355 = scalar_lea.sflag [#allocation4], %s2354
          %s2356 = sand.u32 %s159, 1
          %s2357 = smul.addr %s2356, 8
          %s2358 = scalar_lea.vmem [#allocation7], %s2357
          %2359 = dma.done %s2355, 128
        $region60: #{tpu_custom_call.1} parent=55 // pred_fallthru
          _
      $region56: #{tpu_custom_call.1} parent=5 // pred_fallthru
        _
    $region6: #{tpu_custom_call.1} parent=1 // loop_footer
      %s24 = sadd.s32 1, %s20
    $region7: #{tpu_custom_call.1} parent=1 // loop_footer_branch
      %19 = sbr.rel target = $region3
    $region8: #{tpu_custom_call.1} parent=1 // loop_exit
      _
    %2360 = vsyncpa [#allocation3], 1
    %s2361 = scalar_lea.sflag [#allocation3], 1
    %2362 = vsyncpa %s2361, 1
    %2363 = vsyncpa [#allocation6], 1
    %s2364 = scalar_lea.sflag [#allocation6], 1
    %2365 = vsyncpa %s2364, 1
    %2366 = vsyncpa [#allocation4], 1
    %s2367 = scalar_lea.sflag [#allocation4], 1
    %2368 = vsyncpa %s2367, 1

</llo_original>
